<compile_context>
chip_gen: v5e
topology: v5e:2x2
jax: 0.10.0
libtpu: 0.0.40
codegen_flags: <defaults>
</compile_context>

<pallas_src>
import jax
import jax.numpy as jnp
from jax.experimental import pallas as pl
from jax.experimental.pallas import tpu as pltpu

FEATURE_NUM = 20
H1, H2, H3, OUT = 100, 2000, 100, 1

H2_CHUNK = 512  # layer-2/3 fusion chunk (multiple of 128 -> copy-free slices)


def _round_up(n, m):
    return ((n + m - 1) // m) * m


def _pick_tb(batch):
    """Batch tile: right-sized single tile for small B, >=2 tiles for large B."""
    bp = _round_up(max(batch, 1), 16)
    if bp <= 256:
        return bp                 # one tile == padded batch (full-dim block is legal)
    if batch <= 1024:
        return 128                # 3..8 grid steps; shards across v7x's 2 TCs
    return 512                    # large batch: amortize per-step pipeline overhead


def _mlp_kernel(x_ref,
                w1_ref, b1_ref,
                w2_ref, b2_ref,
                w3_ref, b3_ref,
                w4_ref, b4_ref,
                o_ref):
    """Whole MLP for one batch tile. Weights are VMEM-resident across the grid."""
    cdt = w1_ref.dtype            # compute dtype for MXU inputs (bf16 or f32)
    f32 = jnp.float32

    # Layer 1: (tb, 20) @ (20, 128). K=20 is left unpadded; Mosaic pads layout.
    x = x_ref[...].astype(cdt)
    h1 = jnp.dot(x, w1_ref[...], preferred_element_type=f32) + b1_ref[...]
    h1 = jnp.maximum(h1, 0.0).astype(cdt)

    # Layers 2+3 fused over H2 chunks: the (tb, 2048) activation never fully
    # materializes; the big bias+ReLU epilogue runs in the compute dtype.
    tb = x_ref.shape[0]
    h2_dim = w2_ref.shape[1]
    h3_dim = w3_ref.shape[1]
    acc3 = jnp.zeros((tb, h3_dim), f32)
    c0 = 0
    while c0 < h2_dim:            # static Python loop (4 chunks of 512)
        cw = min(H2_CHUNK, h2_dim - c0)
        sl = pl.ds(c0, cw)
        h2c = jnp.dot(h1, w2_ref[:, sl], preferred_element_type=f32)
        h2c = jnp.maximum(h2c.astype(cdt) + b2_ref[:, sl], 0.0)
        acc3 = acc3 + jnp.dot(h2c, w3_ref[sl, :], preferred_element_type=f32)
        c0 += cw

    h3 = jnp.maximum(acc3 + b3_ref[...], 0.0).astype(cdt)

    # Layer 4 (100 -> 1): contract w4 row (1, K) with h3 (tb, K) along K,
    # giving a lane-dense (1, tb) result (batch on the lane axis).
    y = jax.lax.dot_general(
        w4_ref[...], h3,
        dimension_numbers=(((1,), (1,)), ((), ())),
        preferred_element_type=f32)
    o_ref[...] = (y + b4_ref[...]).astype(o_ref.dtype)


def prepare_params(params, compute_dtype=jnp.bfloat16):
    """One-time padding/casting of the parameters (call once, reuse per step).

    Weights in (in_dim, out_dim) layout, biases (1, out_dim). Hidden dims are
    zero-padded to lane multiples (100->128, 2000->2048); padded units stay
    exactly zero through every ReLU, so the math is unchanged.
    """
    cd = compute_dtype
    f_in = params["w1"].shape[0]
    h1p, h2p, h3p = (_round_up(d, 128) for d in (H1, H2, H3))

    def pad2(a, shape):
        return jnp.pad(a, ((0, shape[0] - a.shape[0]), (0, shape[1] - a.shape[1])))

    return {
        "w1": pad2(params["w1"], (f_in, h1p)).astype(cd),      # K=20 unpadded
        "b1": pad2(params["b1"], (1, h1p)).astype(jnp.float32),
        "w2": pad2(params["w2"], (h1p, h2p)).astype(cd),
        "b2": pad2(params["b2"], (1, h2p)).astype(cd),          # compute-dtype epilogue
        "w3": pad2(params["w3"], (h2p, h3p)).astype(cd),
        "b3": pad2(params["b3"], (1, h3p)).astype(jnp.float32),
        "w4": pad2(params["w4"].T, (1, h3p)).astype(cd),        # (1, K) row form
        "b4": params["b4"].astype(jnp.float32).reshape(1, 1),
    }


def dnn_model_forward(x, prepared, *, tb=None):
    """Forward pass. x: (B, feature_num) f32, prepared: output of prepare_params.

    Returns (B, 1) float32, matching the PyTorch module.
    """
    B, F = x.shape
    if tb is None:
        tb = _pick_tb(B)
    b_pad = _round_up(B, tb)
    n_tiles = b_pad // tb

    # Only the (tiny) batch dim is padded; the feature dim stays at 20 in HBM.
    xp = x if b_pad == B else jnp.pad(x, ((0, b_pad - B), (0, 0)))

    w1, b1 = prepared["w1"], prepared["b1"]
    w2, b2 = prepared["w2"], prepared["b2"]
    w3, b3 = prepared["w3"], prepared["b3"]
    w4, b4 = prepared["w4"], prepared["b4"]

    flops = 2 * b_pad * (F * w1.shape[1]
                         + w2.shape[0] * w2.shape[1]
                         + w3.shape[0] * w3.shape[1]
                         + w4.shape[1])
    bytes_accessed = (xp.size * xp.dtype.itemsize
                      + sum(int(p.size) * p.dtype.itemsize for p in prepared.values())
                      + b_pad * 4)

    # Grid-invariant weights/biases: single-buffered, fetched once, VMEM-resident.
    def const_spec(a):
        return pl.BlockSpec(a.shape, lambda i: (0, 0), pipeline_mode=pl.Buffered(1))

    out = pl.pallas_call(
        _mlp_kernel,
        out_shape=jax.ShapeDtypeStruct((1, b_pad), jnp.float32),
        grid_spec=pl.GridSpec(
            grid=(n_tiles,),
            in_specs=[
                pl.BlockSpec((tb, F), lambda i: (i, 0)),   # x batch tile, K=20
                const_spec(w1), const_spec(b1),
                const_spec(w2), const_spec(b2),
                const_spec(w3), const_spec(b3),
                const_spec(w4), const_spec(b4),
            ],
            # lane-dense output: batch on the lane axis
            out_specs=pl.BlockSpec((1, tb), lambda i: (0, i)),
        ),
        compiler_params=pltpu.CompilerParams(
            dimension_semantics=("parallel",),
            vmem_limit_bytes=32 * 1024 * 1024,
        ),
        cost_estimate=pl.CostEstimate(
            flops=flops, transcendentals=0, bytes_accessed=bytes_accessed),
    )(xp, w1, b1, w2, b2, w3, b3, w4, b4)

    return out[0, :B].reshape(B, OUT)


def init_params(key):
    """Deterministic synthetic parameters (xavier-uniform-ish), (in,out) layout."""
    dims = [(FEATURE_NUM, H1), (H1, H2), (H2, H3), (H3, OUT)]
    params = {}
    for idx, (fan_in, fan_out) in enumerate(dims, start=1):
        key, kw, kb = jax.random.split(key, 3)
        limit = jnp.sqrt(6.0 / (fan_in + fan_out))
        params[f"w{idx}"] = jax.random.uniform(
            kw, (fan_in, fan_out), jnp.float32, -limit, limit)
        params[f"b{idx}"] = jax.random.uniform(
            kb, (1, fan_out), jnp.float32, -0.01, 0.01)
    return params


def reference_forward(x, params, compute_dtype=jnp.float32):
    cd = compute_dtype

    def lin(h, w, b):
        return jnp.dot(h.astype(cd), w.astype(cd),
                       preferred_element_type=jnp.float32) + b

    h = jnp.maximum(lin(x, params["w1"], params["b1"]), 0.0)
    h = jnp.maximum(lin(h, params["w2"], params["b2"]), 0.0)
    h = jnp.maximum(lin(h, params["w3"], params["b3"]), 0.0)
    return lin(h, params["w4"], params["b4"])


if __name__ == "__main__":
    key = jax.random.PRNGKey(0)
    key, kx_small, kx_big = jax.random.split(key, 3)
    params = init_params(key)

    # --- small batch, float32 compute (exact parity with the f32 reference) ---
    B = 8
    x = jax.random.normal(kx_small, (B, FEATURE_NUM), jnp.float32)
    prep_f32 = prepare_params(params, compute_dtype=jnp.float32)
    out_f32 = jax.block_until_ready(dnn_model_forward(x, prep_f32))
    ref_f32 = reference_forward(x, params, compute_dtype=jnp.float32)
    assert out_f32.shape == (B, OUT)
    assert jnp.allclose(out_f32, ref_f32, atol=1e-3, rtol=1e-3), \
        "f32 kernel mismatch vs reference"

    # --- small batch, bf16 matmul inputs (default; MXU-native on v6e/v7x) ---
    prep_bf16 = prepare_params(params, compute_dtype=jnp.bfloat16)
    out_bf16 = jax.block_until_ready(dnn_model_forward(x, prep_bf16))
    ref_bf16 = reference_forward(x, params, compute_dtype=jnp.bfloat16)
    assert out_bf16.shape == (B, OUT)
    assert jnp.allclose(out_bf16, ref_bf16, atol=3e-2, rtol=3e-2), \
        "bf16 kernel mismatch vs reference"

    # --- multi-tile batch (exercises the >=2 grid steps / megacore path) ---
    Bm = 320
    xm = jax.random.normal(kx_big, (Bm, FEATURE_NUM), jnp.float32)
    out_m = jax.block_until_ready(dnn_model_forward(xm, prep_bf16))
    ref_m = reference_forward(xm, params, compute_dtype=jnp.bfloat16)
    assert out_m.shape == (Bm, OUT)
    assert jnp.allclose(out_m, ref_m, atol=3e-2, rtol=3e-2), \
        "multi-tile bf16 kernel mismatch vs reference"

    print("KERNEL_OK")
</pallas_src>

<mosaic_0001>
module attributes {stable_mosaic.version = 11 : i64} {
  func.func @_mlp_kernel(%arg0: i32, %arg1: memref<16x20xf32, #tpu.memory_space<vmem>>, %arg2: memref<20x128xf32, #tpu.memory_space<vmem>>, %arg3: memref<1x128xf32, #tpu.memory_space<vmem>>, %arg4: memref<128x2048xf32, #tpu.memory_space<vmem>>, %arg5: memref<1x2048xf32, #tpu.memory_space<vmem>>, %arg6: memref<2048x128xf32, #tpu.memory_space<vmem>>, %arg7: memref<1x128xf32, #tpu.memory_space<vmem>>, %arg8: memref<1x128xf32, #tpu.memory_space<vmem>>, %arg9: memref<1x1xf32, #tpu.memory_space<vmem>>, %arg10: memref<1x16xf32, #tpu.memory_space<vmem>>) attributes {dimension_semantics = [#tpu.dimension_semantics<parallel>], iteration_bounds = array<i64: 1>, scalar_prefetch = 0 : i64, scratch_operands = 0 : i64, tpu.core_type = #tpu.core_type<tc>, window_params = [{transform_indices = @transform_0, window_bounds = array<i64: 16, 20>}, {pipeline_mode = #tpu.pipeline_mode<synchronous>, transform_indices = @transform_1, window_bounds = array<i64: 20, 128>}, {pipeline_mode = #tpu.pipeline_mode<synchronous>, transform_indices = @transform_2, window_bounds = array<i64: 1, 128>}, {pipeline_mode = #tpu.pipeline_mode<synchronous>, transform_indices = @transform_3, window_bounds = array<i64: 128, 2048>}, {pipeline_mode = #tpu.pipeline_mode<synchronous>, transform_indices = @transform_4, window_bounds = array<i64: 1, 2048>}, {pipeline_mode = #tpu.pipeline_mode<synchronous>, transform_indices = @transform_5, window_bounds = array<i64: 2048, 128>}, {pipeline_mode = #tpu.pipeline_mode<synchronous>, transform_indices = @transform_6, window_bounds = array<i64: 1, 128>}, {pipeline_mode = #tpu.pipeline_mode<synchronous>, transform_indices = @transform_7, window_bounds = array<i64: 1, 128>}, {pipeline_mode = #tpu.pipeline_mode<synchronous>, transform_indices = @transform_8, window_bounds = array<i64: 1, 1>}, {transform_indices = @transform_9, window_bounds = array<i64: 1, 16>}]} {
    %c0 = arith.constant 0 : index
    %c0_0 = arith.constant 0 : index
    %0 = vector.load %arg1[%c0, %c0_0] : memref<16x20xf32, #tpu.memory_space<vmem>>, vector<16x20xf32>
    %c0_1 = arith.constant 0 : index
    %c0_2 = arith.constant 0 : index
    %1 = vector.load %arg2[%c0_1, %c0_2] : memref<20x128xf32, #tpu.memory_space<vmem>>, vector<20x128xf32>
    %cst = arith.constant dense<0.000000e+00> : vector<16x128xf32>
    %2 = tpu.matmul %0, %1, %cst {dimension_numbers = #tpu.dot_dimension_numbers<[1], [0], [0], [1], [0, 0, 1, 1], [], []>} : vector<16x20xf32>, vector<20x128xf32>, vector<16x128xf32> -> vector<16x128xf32>
    %c0_3 = arith.constant 0 : index
    %c0_4 = arith.constant 0 : index
    %3 = vector.load %arg3[%c0_3, %c0_4] : memref<1x128xf32, #tpu.memory_space<vmem>>, vector<1x128xf32>
    %4 = vector.broadcast %3 : vector<1x128xf32> to vector<16x128xf32>
    %5 = arith.addf %2, %4 : vector<16x128xf32>
    %cst_5 = arith.constant 0.000000e+00 : f32
    %6 = vector.broadcast %cst_5 : f32 to vector<16x128xf32>
    %7 = arith.maximumf %5, %6 : vector<16x128xf32>
    %cst_6 = arith.constant 0.000000e+00 : f32
    %8 = vector.broadcast %cst_6 : f32 to vector<16x128xf32>
    %c0_7 = arith.constant 0 : index
    %c0_8 = arith.constant 0 : index
    %9 = vector.load %arg4[%c0_7, %c0_8] : memref<128x2048xf32, #tpu.memory_space<vmem>>, vector<128x512xf32>
    %cst_9 = arith.constant dense<0.000000e+00> : vector<16x512xf32>
    %10 = tpu.matmul %7, %9, %cst_9 {dimension_numbers = #tpu.dot_dimension_numbers<[1], [0], [0], [1], [0, 0, 1, 1], [], []>} : vector<16x128xf32>, vector<128x512xf32>, vector<16x512xf32> -> vector<16x512xf32>
    %c0_10 = arith.constant 0 : index
    %c0_11 = arith.constant 0 : index
    %11 = vector.load %arg5[%c0_10, %c0_11] : memref<1x2048xf32, #tpu.memory_space<vmem>>, vector<1x512xf32>
    %12 = vector.broadcast %11 : vector<1x512xf32> to vector<16x512xf32>
    %13 = arith.addf %10, %12 : vector<16x512xf32>
    %cst_12 = arith.constant 0.000000e+00 : f32
    %14 = vector.broadcast %cst_12 : f32 to vector<16x512xf32>
    %15 = arith.maximumf %13, %14 : vector<16x512xf32>
    %c0_13 = arith.constant 0 : index
    %c0_14 = arith.constant 0 : index
    %16 = vector.load %arg6[%c0_13, %c0_14] : memref<2048x128xf32, #tpu.memory_space<vmem>>, vector<512x128xf32>
    %cst_15 = arith.constant dense<0.000000e+00> : vector<16x128xf32>
    %17 = tpu.matmul %15, %16, %cst_15 {dimension_numbers = #tpu.dot_dimension_numbers<[1], [0], [0], [1], [0, 0, 1, 1], [], []>} : vector<16x512xf32>, vector<512x128xf32>, vector<16x128xf32> -> vector<16x128xf32>
    %18 = arith.addf %8, %17 : vector<16x128xf32>
    %c0_16 = arith.constant 0 : index
    %c512 = arith.constant 512 : index
    %19 = vector.load %arg4[%c0_16, %c512] : memref<128x2048xf32, #tpu.memory_space<vmem>>, vector<128x512xf32>
    %cst_17 = arith.constant dense<0.000000e+00> : vector<16x512xf32>
    %20 = tpu.matmul %7, %19, %cst_17 {dimension_numbers = #tpu.dot_dimension_numbers<[1], [0], [0], [1], [0, 0, 1, 1], [], []>} : vector<16x128xf32>, vector<128x512xf32>, vector<16x512xf32> -> vector<16x512xf32>
    %c0_18 = arith.constant 0 : index
    %c512_19 = arith.constant 512 : index
    %21 = vector.load %arg5[%c0_18, %c512_19] : memref<1x2048xf32, #tpu.memory_space<vmem>>, vector<1x512xf32>
    %22 = vector.broadcast %21 : vector<1x512xf32> to vector<16x512xf32>
    %23 = arith.addf %20, %22 : vector<16x512xf32>
    %cst_20 = arith.constant 0.000000e+00 : f32
    %24 = vector.broadcast %cst_20 : f32 to vector<16x512xf32>
    %25 = arith.maximumf %23, %24 : vector<16x512xf32>
    %c512_21 = arith.constant 512 : index
    %c0_22 = arith.constant 0 : index
    %26 = vector.load %arg6[%c512_21, %c0_22] : memref<2048x128xf32, #tpu.memory_space<vmem>>, vector<512x128xf32>
    %cst_23 = arith.constant dense<0.000000e+00> : vector<16x128xf32>
    %27 = tpu.matmul %25, %26, %cst_23 {dimension_numbers = #tpu.dot_dimension_numbers<[1], [0], [0], [1], [0, 0, 1, 1], [], []>} : vector<16x512xf32>, vector<512x128xf32>, vector<16x128xf32> -> vector<16x128xf32>
    %28 = arith.addf %18, %27 : vector<16x128xf32>
    %c0_24 = arith.constant 0 : index
    %c1024 = arith.constant 1024 : index
    %29 = vector.load %arg4[%c0_24, %c1024] : memref<128x2048xf32, #tpu.memory_space<vmem>>, vector<128x512xf32>
    %cst_25 = arith.constant dense<0.000000e+00> : vector<16x512xf32>
    %30 = tpu.matmul %7, %29, %cst_25 {dimension_numbers = #tpu.dot_dimension_numbers<[1], [0], [0], [1], [0, 0, 1, 1], [], []>} : vector<16x128xf32>, vector<128x512xf32>, vector<16x512xf32> -> vector<16x512xf32>
    %c0_26 = arith.constant 0 : index
    %c1024_27 = arith.constant 1024 : index
    %31 = vector.load %arg5[%c0_26, %c1024_27] : memref<1x2048xf32, #tpu.memory_space<vmem>>, vector<1x512xf32>
    %32 = vector.broadcast %31 : vector<1x512xf32> to vector<16x512xf32>
    %33 = arith.addf %30, %32 : vector<16x512xf32>
    %cst_28 = arith.constant 0.000000e+00 : f32
    %34 = vector.broadcast %cst_28 : f32 to vector<16x512xf32>
    %35 = arith.maximumf %33, %34 : vector<16x512xf32>
    %c1024_29 = arith.constant 1024 : index
    %c0_30 = arith.constant 0 : index
    %36 = vector.load %arg6[%c1024_29, %c0_30] : memref<2048x128xf32, #tpu.memory_space<vmem>>, vector<512x128xf32>
    %cst_31 = arith.constant dense<0.000000e+00> : vector<16x128xf32>
    %37 = tpu.matmul %35, %36, %cst_31 {dimension_numbers = #tpu.dot_dimension_numbers<[1], [0], [0], [1], [0, 0, 1, 1], [], []>} : vector<16x512xf32>, vector<512x128xf32>, vector<16x128xf32> -> vector<16x128xf32>
    %38 = arith.addf %28, %37 : vector<16x128xf32>
    %c0_32 = arith.constant 0 : index
    %c1536 = arith.constant 1536 : index
    %39 = vector.load %arg4[%c0_32, %c1536] : memref<128x2048xf32, #tpu.memory_space<vmem>>, vector<128x512xf32>
    %cst_33 = arith.constant dense<0.000000e+00> : vector<16x512xf32>
    %40 = tpu.matmul %7, %39, %cst_33 {dimension_numbers = #tpu.dot_dimension_numbers<[1], [0], [0], [1], [0, 0, 1, 1], [], []>} : vector<16x128xf32>, vector<128x512xf32>, vector<16x512xf32> -> vector<16x512xf32>
    %c0_34 = arith.constant 0 : index
    %c1536_35 = arith.constant 1536 : index
    %41 = vector.load %arg5[%c0_34, %c1536_35] : memref<1x2048xf32, #tpu.memory_space<vmem>>, vector<1x512xf32>
    %42 = vector.broadcast %41 : vector<1x512xf32> to vector<16x512xf32>
    %43 = arith.addf %40, %42 : vector<16x512xf32>
    %cst_36 = arith.constant 0.000000e+00 : f32
    %44 = vector.broadcast %cst_36 : f32 to vector<16x512xf32>
    %45 = arith.maximumf %43, %44 : vector<16x512xf32>
    %c1536_37 = arith.constant 1536 : index
    %c0_38 = arith.constant 0 : index
    %46 = vector.load %arg6[%c1536_37, %c0_38] : memref<2048x128xf32, #tpu.memory_space<vmem>>, vector<512x128xf32>
    %cst_39 = arith.constant dense<0.000000e+00> : vector<16x128xf32>
    %47 = tpu.matmul %45, %46, %cst_39 {dimension_numbers = #tpu.dot_dimension_numbers<[1], [0], [0], [1], [0, 0, 1, 1], [], []>} : vector<16x512xf32>, vector<512x128xf32>, vector<16x128xf32> -> vector<16x128xf32>
    %48 = arith.addf %38, %47 : vector<16x128xf32>
    %c0_40 = arith.constant 0 : index
    %c0_41 = arith.constant 0 : index
    %49 = vector.load %arg7[%c0_40, %c0_41] : memref<1x128xf32, #tpu.memory_space<vmem>>, vector<1x128xf32>
    %50 = vector.broadcast %49 : vector<1x128xf32> to vector<16x128xf32>
    %51 = arith.addf %48, %50 : vector<16x128xf32>
    %cst_42 = arith.constant 0.000000e+00 : f32
    %52 = vector.broadcast %cst_42 : f32 to vector<16x128xf32>
    %53 = arith.maximumf %51, %52 : vector<16x128xf32>
    %c0_43 = arith.constant 0 : index
    %c0_44 = arith.constant 0 : index
    %54 = vector.load %arg8[%c0_43, %c0_44] : memref<1x128xf32, #tpu.memory_space<vmem>>, vector<1x128xf32>
    %cst_45 = arith.constant dense<0.000000e+00> : vector<1x16xf32>
    %55 = tpu.matmul %54, %53, %cst_45 {dimension_numbers = #tpu.dot_dimension_numbers<[1], [1], [0], [0], [0, 0, 1, 0], [], []>} : vector<1x128xf32>, vector<16x128xf32>, vector<1x16xf32> -> vector<1x16xf32>
    %c0_46 = arith.constant 0 : index
    %c0_47 = arith.constant 0 : index
    %56 = vector.load %arg9[%c0_46, %c0_47] : memref<1x1xf32, #tpu.memory_space<vmem>>, vector<1x1xf32>
    %57 = vector.broadcast %56 : vector<1x1xf32> to vector<1x16xf32>
    %58 = arith.addf %55, %57 : vector<1x16xf32>
    %c0_48 = arith.constant 0 : index
    %c0_49 = arith.constant 0 : index
    %59 = vector.load %arg10[%c0_48, %c0_49] : memref<1x16xf32, #tpu.memory_space<vmem>>, vector<1x16xf32>
    tpu.vector_store %arg10[%c0_48, %c0_49], %58 {strides = array<i32>} : memref<1x16xf32, #tpu.memory_space<vmem>>, vector<1x16xf32>,
    return
  }
  func.func @transform_0(%arg0: i32) -> (i32, i32) {
    %c0_i32 = arith.constant 0 : i32
    %c0_i32_0 = arith.constant 0 : i32
    return %arg0, %c0_i32 : i32, i32
  }
  func.func @transform_1(%arg0: i32) -> (i32, i32) {
    %c0_i32 = arith.constant 0 : i32
    %c0_i32_0 = arith.constant 0 : i32
    %c0_i32_1 = arith.constant 0 : i32
    return %c0_i32, %c0_i32_0 : i32, i32
  }
  func.func @transform_2(%arg0: i32) -> (i32, i32) {
    %c0_i32 = arith.constant 0 : i32
    %c0_i32_0 = arith.constant 0 : i32
    %c0_i32_1 = arith.constant 0 : i32
    return %c0_i32, %c0_i32_0 : i32, i32
  }
  func.func @transform_3(%arg0: i32) -> (i32, i32) {
    %c0_i32 = arith.constant 0 : i32
    %c0_i32_0 = arith.constant 0 : i32
    %c0_i32_1 = arith.constant 0 : i32
    return %c0_i32, %c0_i32_0 : i32, i32
  }
  func.func @transform_4(%arg0: i32) -> (i32, i32) {
    %c0_i32 = arith.constant 0 : i32
    %c0_i32_0 = arith.constant 0 : i32
    %c0_i32_1 = arith.constant 0 : i32
    return %c0_i32, %c0_i32_0 : i32, i32
  }
  func.func @transform_5(%arg0: i32) -> (i32, i32) {
    %c0_i32 = arith.constant 0 : i32
    %c0_i32_0 = arith.constant 0 : i32
    %c0_i32_1 = arith.constant 0 : i32
    return %c0_i32, %c0_i32_0 : i32, i32
  }
  func.func @transform_6(%arg0: i32) -> (i32, i32) {
    %c0_i32 = arith.constant 0 : i32
    %c0_i32_0 = arith.constant 0 : i32
    %c0_i32_1 = arith.constant 0 : i32
    return %c0_i32, %c0_i32_0 : i32, i32
  }
  func.func @transform_7(%arg0: i32) -> (i32, i32) {
    %c0_i32 = arith.constant 0 : i32
    %c0_i32_0 = arith.constant 0 : i32
    %c0_i32_1 = arith.constant 0 : i32
    return %c0_i32, %c0_i32_0 : i32, i32
  }
  func.func @transform_8(%arg0: i32) -> (i32, i32) {
    %c0_i32 = arith.constant 0 : i32
    %c0_i32_0 = arith.constant 0 : i32
    %c0_i32_1 = arith.constant 0 : i32
    return %c0_i32, %c0_i32_0 : i32, i32
  }
  func.func @transform_9(%arg0: i32) -> (i32, i32) {
    %c0_i32 = arith.constant 0 : i32
    %c0_i32_0 = arith.constant 0 : i32
    return %c0_i32, %arg0 : i32, i32
  }
}

</mosaic_0001>

<llo_original>
// kernel: tpu_custom_call.1
$region0: #{tpu_custom_call.1}
  #allocation0 [shape = 'u32[]', space=smem, size = 0x4, offset = 0x4, fixed_abs, tag = 'smem constant byte address 0x4 - core index']
  #allocation1 [shape = 'u32[72,128]{1,0:T(1,128)}', space=vmem, size = 0x9000, scoped, tag = 'internal scratch']
  #allocation2 [shape = 'f32[1,1]{1,0:T(1,128)S(1)}', space=vmem, size = 0x200, scoped, tag = 'scoped memory for tpu_custom_call.1']
  %s0 = inlined_call_operand.hbm [shape: f32[16,20], index: 0, kind: input, shape index: {}]
  %s1 = inlined_call_operand.hbm [shape: f32[20,128], index: 1, kind: input, shape index: {}]
  %s2 = inlined_call_operand.vmem [shape: f32[1,128], index: 2, kind: input, shape index: {}]
  %s3 = inlined_call_operand.hbm [shape: f32[128,2048], index: 3, kind: input, shape index: {}]
  %s4 = inlined_call_operand.hbm [shape: f32[1,2048], index: 4, kind: input, shape index: {}]
  %s5 = inlined_call_operand.hbm [shape: f32[2048,128], index: 5, kind: input, shape index: {}]
  %s6 = inlined_call_operand.vmem [shape: f32[1,128], index: 6, kind: input, shape index: {}]
  %s7 = inlined_call_operand.vmem [shape: f32[1,128], index: 7, kind: input, shape index: {}]
  %s8 = inlined_call_operand.<no memory space> [shape: f32[1,1], index: 8, kind: input, shape index: {}]
  %s9 = inlined_call_operand.hbm [shape: f32[1,16], index: 9, kind: output, shape index: {}]
  %s10 = sld [smem:[#allocation0]]
  $region66: #{tpu_custom_call.1} parent=0
    _
  %s12 = ssub.s32 1, %s10
  %s13 = scalar_select 0, %s12, %s10
  %v14 = vstv %s8
  %15 = vst [vmem:[#allocation2] sm:$0x1] %v14
  $region1: #{tpu_custom_call.1} parent=0
    #allocation3 [shape = 'u8[8192]{0}', space=vmem, size = 0x2000, scoped, tag = 'input window, operand 0, single buffered']
    #allocation4 [shape = 's32[1]{0}', space=sflag, size = 0x4, scoped, tag = 'scoped memory for tpu_custom_call.1']
    #allocation5 [shape = 's32[1]{0}', space=sflag, size = 0x4, scoped, tag = 'scoped memory for tpu_custom_call.1']
    #allocation6 [shape = 'u8[12288]{0}', space=vmem, size = 0x3000, scoped, tag = 'input window, operand 1, single buffered']
    #allocation7 [shape = 's32[1]{0}', space=sflag, size = 0x4, scoped, tag = 'scoped memory for tpu_custom_call.1']
    #allocation8 [shape = 'u8[1048576]{0}', space=vmem, size = 0x100000, scoped, tag = 'input window, operand 3, single buffered']
    #allocation9 [shape = 'u8[8192]{0}', space=vmem, size = 0x2000, scoped, tag = 'input window, operand 4, single buffered']
    #allocation10 [shape = 's32[1]{0}', space=sflag, size = 0x4, scoped, tag = 'scoped memory for tpu_custom_call.1']
    #allocation11 [shape = 'u8[1048576]{0}', space=vmem, size = 0x100000, scoped, tag = 'input window, operand 5, single buffered']
    #allocation12 [shape = 'u8[512]{0}', space=vmem, size = 0x400, scoped, tag = 'output window, operand 0, single buffered']
    %16 = vsyncpa [#allocation4], 0
    %17 = vsyncpa [#allocation7], 0
    %18 = vsyncpa [#allocation10], 0
    %19 = vsyncpa [#allocation5], 0
    // Predicated region
    $region2: #{tpu_custom_call.1} parent=1 // pred_check
      _
    $region3: #{tpu_custom_call.1} parent=1 // pred_check_branch
      %21 = sbr.rel (0) target = $region5
    $region4: #{tpu_custom_call.1} parent=1 // pred_region
      %23 = vsyncadd [#allocation4], 0
      %s24 = sshll.u32 %s0, 4
      %s25 = int_to_ptr.hbm [resolvable:$true] %s24
      %s26 = sshll.u32 [#allocation3], 4
      %s27 = int_to_ptr.vmem [resolvable:$true] %s26
      %32 = dma.hbm_to_vmem [thread:$0]  %s25, 256, %s27, [#allocation4], 128, 128, 8
    $region5: #{tpu_custom_call.1} parent=1 // pred_fallthru
      _
    // Predicated region
    $region6: #{tpu_custom_call.1} parent=1 // pred_check
      _
    $region7: #{tpu_custom_call.1} parent=1 // pred_check_branch
      %34 = sbr.rel (0) target = $region9
    $region8: #{tpu_custom_call.1} parent=1 // pred_region
      %36 = vsyncadd [#allocation7], 0
      %s37 = sshll.u32 %s1, 4
      %s38 = int_to_ptr.hbm [resolvable:$true] %s37
      %s39 = sshll.u32 [#allocation6], 4
      %s40 = int_to_ptr.vmem [resolvable:$true] %s39
      %45 = dma.hbm_to_vmem [thread:$0]  %s38, 384, %s40, [#allocation7], 128, 128, 8
    $region9: #{tpu_custom_call.1} parent=1 // pred_fallthru
      _
    // Predicated region
    $region10: #{tpu_custom_call.1} parent=1 // pred_check
      _
    $region11: #{tpu_custom_call.1} parent=1 // pred_check_branch
      %47 = sbr.rel (0) target = $region13
    $region12: #{tpu_custom_call.1} parent=1 // pred_region
      _
    $region13: #{tpu_custom_call.1} parent=1 // pred_fallthru
      _
    // Predicated region
    $region14: #{tpu_custom_call.1} parent=1 // pred_check
      _
    $region15: #{tpu_custom_call.1} parent=1 // pred_check_branch
      %49 = sbr.rel (0) target = $region17
    $region16: #{tpu_custom_call.1} parent=1 // pred_region
      %51 = vsyncadd [#allocation7], 0
      %s52 = sshll.u32 %s3, 4
      %s53 = int_to_ptr.hbm [resolvable:$true] %s52
      %s54 = sshll.u32 [#allocation8], 4
      %s55 = int_to_ptr.vmem [resolvable:$true] %s54
      %60 = dma.hbm_to_vmem [thread:$0]  %s53, 32768, %s55, [#allocation7], 2048, 2048, 128
    $region17: #{tpu_custom_call.1} parent=1 // pred_fallthru
      _
    // Predicated region
    $region18: #{tpu_custom_call.1} parent=1 // pred_check
      _
    $region19: #{tpu_custom_call.1} parent=1 // pred_check_branch
      %62 = sbr.rel (0) target = $region21
    $region20: #{tpu_custom_call.1} parent=1 // pred_region
      %64 = vsyncadd [#allocation10], 0
      %s66 = sshll.u32 %s4, 4
      %s67 = int_to_ptr.hbm [resolvable:$true] %s66
      %s68 = sshll.u32 [#allocation9], 4
      %s69 = int_to_ptr.vmem [resolvable:$true] %s68
      %71 = dma.hbm_to_vmem [thread:$0]  %s67, 256, %s69, [#allocation10]
    $region21: #{tpu_custom_call.1} parent=1 // pred_fallthru
      _
    // Predicated region
    $region22: #{tpu_custom_call.1} parent=1 // pred_check
      _
    $region23: #{tpu_custom_call.1} parent=1 // pred_check_branch
      %73 = sbr.rel (0) target = $region25
    $region24: #{tpu_custom_call.1} parent=1 // pred_region
      %75 = vsyncadd [#allocation10], 0
      %s76 = sshll.u32 %s5, 4
      %s77 = int_to_ptr.hbm [resolvable:$true] %s76
      %s78 = sshll.u32 [#allocation11], 4
      %s79 = int_to_ptr.vmem [resolvable:$true] %s78
      %84 = dma.hbm_to_vmem [thread:$0]  %s77, 32768, %s79, [#allocation10], 128, 128, 8
    $region25: #{tpu_custom_call.1} parent=1 // pred_fallthru
      _
    // Predicated region
    $region26: #{tpu_custom_call.1} parent=1 // pred_check
      _
    $region27: #{tpu_custom_call.1} parent=1 // pred_check_branch
      %86 = sbr.rel (0) target = $region29
    $region28: #{tpu_custom_call.1} parent=1 // pred_region
      _
    $region29: #{tpu_custom_call.1} parent=1 // pred_fallthru
      _
    // Predicated region
    $region30: #{tpu_custom_call.1} parent=1 // pred_check
      _
    $region31: #{tpu_custom_call.1} parent=1 // pred_check_branch
      %88 = sbr.rel (0) target = $region33
    $region32: #{tpu_custom_call.1} parent=1 // pred_region
      _
    $region33: #{tpu_custom_call.1} parent=1 // pred_fallthru
      _
    // Predicated region
    $region34: #{tpu_custom_call.1} parent=1 // pred_check
      _
    $region35: #{tpu_custom_call.1} parent=1 // pred_check_branch
      %90 = sbr.rel (0) target = $region37
    $region36: #{tpu_custom_call.1} parent=1 // pred_region
      _
    $region37: #{tpu_custom_call.1} parent=1 // pred_fallthru
      _
    // Predicated region
    $region38: #{tpu_custom_call.1} parent=1 // pred_check
      _
    $region39: #{tpu_custom_call.1} parent=1 // pred_check_branch
      %92 = sbr.rel (0) target = $region41
    $region40: #{tpu_custom_call.1} parent=1 // pred_region
      %94 = dma.done [#allocation4], 256
    $region41: #{tpu_custom_call.1} parent=1 // pred_fallthru
      _
    // Predicated region
    $region42: #{tpu_custom_call.1} parent=1 // pred_check
      _
    $region43: #{tpu_custom_call.1} parent=1 // pred_check_branch
      %96 = sbr.rel (0) target = $region45
    $region44: #{tpu_custom_call.1} parent=1 // pred_region
      %98 = dma.done [#allocation7], 384
    $region45: #{tpu_custom_call.1} parent=1 // pred_fallthru
      _
    // Predicated region
    $region46: #{tpu_custom_call.1} parent=1 // pred_check
      _
    $region47: #{tpu_custom_call.1} parent=1 // pred_check_branch
      %100 = sbr.rel (0) target = $region49
    $region48: #{tpu_custom_call.1} parent=1 // pred_region
      %102 = dma.done [#allocation7], 32768
    $region49: #{tpu_custom_call.1} parent=1 // pred_fallthru
      _
    // Predicated region
    $region50: #{tpu_custom_call.1} parent=1 // pred_check
      _
    $region51: #{tpu_custom_call.1} parent=1 // pred_check_branch
      %104 = sbr.rel (0) target = $region53
    $region52: #{tpu_custom_call.1} parent=1 // pred_region
      %106 = dma.done [#allocation10], 256
    $region53: #{tpu_custom_call.1} parent=1 // pred_fallthru
      _
    // Predicated region
    $region54: #{tpu_custom_call.1} parent=1 // pred_check
      _
    $region55: #{tpu_custom_call.1} parent=1 // pred_check_branch
      %108 = sbr.rel (0) target = $region57
    $region56: #{tpu_custom_call.1} parent=1 // pred_region
      %110 = dma.done [#allocation10], 32768
    $region57: #{tpu_custom_call.1} parent=1 // pred_fallthru
      _
    %v111 = vld [vmem:[#allocation3] sm:$0xff]
    %v112 = vld [vmem:[#allocation3 + $0x8] sm:$0xff]
    %v113 = vld [vmem:[#allocation6] sm:$0xff]
    %v114 = vld [vmem:[#allocation6 + $0x8] sm:$0xff]
    %v115 = vld [vmem:[#allocation6 + $0x10] sm:$0xf]
    %v116 = vld [vmem:[%s2] sm:$0x1]
    %v118 = vperm.slane %v116, 0
    %vm120 = vcmask 162816
    %v122 = vsel %vm120, %v111, 0
    %v125 = vsel %vm120, %v112, 0
    %vm127 = vcmask 1043456
    %v129 = vsel %vm127, %v115, 0
    %131 = vmatpush.msra.mxu0 0.0
    %132 = vmatpush.msra.mxu0 0.0
    %133 = vmatpush.msra.mxu0 0.0
    %134 = vmatpush.msra.mxu0 0.0
    %135 = vmatpush.msra.mxu0 0.0
    %136 = vmatpush.msra.mxu0 0.0
    %137 = vmatpush.msra.mxu0 0.0
    %138 = vmatpush.msra.mxu0 0.0
    %139 = vmatpush.msra.mxu0 0.0
    %140 = vmatpush.msra.mxu0 0.0
    %141 = vmatpush.msra.mxu0 0.0
    %142 = vmatpush.msra.mxu0 0.0
    %143 = vmatpush.msra.mxu0 0.0
    %144 = vmatpush.msra.mxu0 %v129
    %145 = vmatpush.msra.mxu0 %v114
    %146 = vmatpush.msra.mxu0 %v113
    %147 = vmatmul.f32.gmra.mxu0 %v122
    %v148 = vpop.f32.mrf.mxu0
    %v149 = vadd.f32 %v118, %v148
    %150 = vmatmul.f32.gmra.mxu0 %v125
    %v151 = vpop.f32.mrf.mxu0
    %v152 = vadd.f32 %v118, %v151
    %153 = vdwg.mxu0
    %v154 = vmax.f32 %v149, 0.0
    %v155 = vmax.f32 %v152, 0.0
    %v156 = vld [vmem:[#allocation8] sm:$0xff]
    %v157 = vld [vmem:[#allocation8 + $0x8] sm:$0xff]
    %v158 = vld [vmem:[#allocation8 + $0x10] sm:$0xff]
    %v159 = vld [vmem:[#allocation8 + $0x18] sm:$0xff]
    %v160 = vld [vmem:[#allocation8 + $0x80] sm:$0xff]
    %v161 = vld [vmem:[#allocation8 + $0x88] sm:$0xff]
    %v162 = vld [vmem:[#allocation8 + $0x90] sm:$0xff]
    %v163 = vld [vmem:[#allocation8 + $0x98] sm:$0xff]
    %v164 = vld [vmem:[#allocation8 + $0x100] sm:$0xff]
    %v165 = vld [vmem:[#allocation8 + $0x108] sm:$0xff]
    %v166 = vld [vmem:[#allocation8 + $0x110] sm:$0xff]
    %v167 = vld [vmem:[#allocation8 + $0x118] sm:$0xff]
    %v168 = vld [vmem:[#allocation8 + $0x180] sm:$0xff]
    %v169 = vld [vmem:[#allocation8 + $0x188] sm:$0xff]
    %v170 = vld [vmem:[#allocation8 + $0x190] sm:$0xff]
    %v171 = vld [vmem:[#allocation8 + $0x198] sm:$0xff]
    %v172 = vld [vmem:[#allocation8 + $0x200] sm:$0xff]
    %v173 = vld [vmem:[#allocation8 + $0x208] sm:$0xff]
    %v174 = vld [vmem:[#allocation8 + $0x210] sm:$0xff]
    %v175 = vld [vmem:[#allocation8 + $0x218] sm:$0xff]
    %v176 = vld [vmem:[#allocation8 + $0x280] sm:$0xff]
    %v177 = vld [vmem:[#allocation8 + $0x288] sm:$0xff]
    %v178 = vld [vmem:[#allocation8 + $0x290] sm:$0xff]
    %v179 = vld [vmem:[#allocation8 + $0x298] sm:$0xff]
    %v180 = vld [vmem:[#allocation8 + $0x300] sm:$0xff]
    %v181 = vld [vmem:[#allocation8 + $0x308] sm:$0xff]
    %v182 = vld [vmem:[#allocation8 + $0x310] sm:$0xff]
    %v183 = vld [vmem:[#allocation8 + $0x318] sm:$0xff]
    %v184 = vld [vmem:[#allocation8 + $0x380] sm:$0xff]
    %v185 = vld [vmem:[#allocation8 + $0x388] sm:$0xff]
    %v186 = vld [vmem:[#allocation8 + $0x390] sm:$0xff]
    %v187 = vld [vmem:[#allocation8 + $0x398] sm:$0xff]
    %v188 = vld [vmem:[#allocation8 + $0x400] sm:$0xff]
    %v189 = vld [vmem:[#allocation8 + $0x408] sm:$0xff]
    %v190 = vld [vmem:[#allocation8 + $0x410] sm:$0xff]
    %v191 = vld [vmem:[#allocation8 + $0x418] sm:$0xff]
    %v192 = vld [vmem:[#allocation8 + $0x480] sm:$0xff]
    %v193 = vld [vmem:[#allocation8 + $0x488] sm:$0xff]
    %v194 = vld [vmem:[#allocation8 + $0x490] sm:$0xff]
    %v195 = vld [vmem:[#allocation8 + $0x498] sm:$0xff]
    %v196 = vld [vmem:[#allocation8 + $0x500] sm:$0xff]
    %v197 = vld [vmem:[#allocation8 + $0x508] sm:$0xff]
    %v198 = vld [vmem:[#allocation8 + $0x510] sm:$0xff]
    %v199 = vld [vmem:[#allocation8 + $0x518] sm:$0xff]
    %v200 = vld [vmem:[#allocation8 + $0x580] sm:$0xff]
    %v201 = vld [vmem:[#allocation8 + $0x588] sm:$0xff]
    %v202 = vld [vmem:[#allocation8 + $0x590] sm:$0xff]
    %v203 = vld [vmem:[#allocation8 + $0x598] sm:$0xff]
    %v204 = vld [vmem:[#allocation8 + $0x600] sm:$0xff]
    %v205 = vld [vmem:[#allocation8 + $0x608] sm:$0xff]
    %v206 = vld [vmem:[#allocation8 + $0x610] sm:$0xff]
    %v207 = vld [vmem:[#allocation8 + $0x618] sm:$0xff]
    %v208 = vld [vmem:[#allocation8 + $0x680] sm:$0xff]
    %v209 = vld [vmem:[#allocation8 + $0x688] sm:$0xff]
    %v210 = vld [vmem:[#allocation8 + $0x690] sm:$0xff]
    %v211 = vld [vmem:[#allocation8 + $0x698] sm:$0xff]
    %v212 = vld [vmem:[#allocation8 + $0x700] sm:$0xff]
    %v213 = vld [vmem:[#allocation8 + $0x708] sm:$0xff]
    %v214 = vld [vmem:[#allocation8 + $0x710] sm:$0xff]
    %v215 = vld [vmem:[#allocation8 + $0x718] sm:$0xff]
    %v216 = vld [vmem:[#allocation8 + $0x780] sm:$0xff]
    %v217 = vld [vmem:[#allocation8 + $0x788] sm:$0xff]
    %v218 = vld [vmem:[#allocation8 + $0x790] sm:$0xff]
    %v219 = vld [vmem:[#allocation8 + $0x798] sm:$0xff]
    %v220 = vld [vmem:[#allocation9] sm:$0xf]
    %v222 = vperm.slane %v220, 0
    %v223 = vperm.slane %v220, 1
    %v224 = vperm.slane %v220, 2
    %v225 = vperm.slane %v220, 3
    %230 = vmatpush.msra.mxu0 %v216
    %231 = vmatpush.msra.mxu0 %v212
    %232 = vmatpush.msra.mxu0 %v208
    %233 = vmatpush.msra.mxu0 %v204
    %234 = vmatpush.msra.mxu0 %v200
    %235 = vmatpush.msra.mxu0 %v196
    %236 = vmatpush.msra.mxu0 %v192
    %237 = vmatpush.msra.mxu0 %v188
    %238 = vmatpush.msra.mxu0 %v184
    %239 = vmatpush.msra.mxu0 %v180
    %240 = vmatpush.msra.mxu0 %v176
    %241 = vmatpush.msra.mxu0 %v172
    %242 = vmatpush.msra.mxu0 %v168
    %243 = vmatpush.msra.mxu0 %v164
    %244 = vmatpush.msra.mxu0 %v160
    %245 = vmatpush.msra.mxu0 %v156
    %246 = vmatmul.f32.gmra.mxu0 %v154
    %v247 = vpop.f32.mrf.mxu0
    %v248 = vadd.f32 %v222, %v247
    %249 = vmatmul.f32.gmra.mxu0 %v155
    %v250 = vpop.f32.mrf.mxu0
    %v251 = vadd.f32 %v222, %v250
    %252 = vdwg.mxu0
    %253 = vmatpush.msra.mxu0 %v217
    %254 = vmatpush.msra.mxu0 %v213
    %255 = vmatpush.msra.mxu0 %v209
    %256 = vmatpush.msra.mxu0 %v205
    %257 = vmatpush.msra.mxu0 %v201
    %258 = vmatpush.msra.mxu0 %v197
    %259 = vmatpush.msra.mxu0 %v193
    %260 = vmatpush.msra.mxu0 %v189
    %261 = vmatpush.msra.mxu0 %v185
    %262 = vmatpush.msra.mxu0 %v181
    %263 = vmatpush.msra.mxu0 %v177
    %264 = vmatpush.msra.mxu0 %v173
    %265 = vmatpush.msra.mxu0 %v169
    %266 = vmatpush.msra.mxu0 %v165
    %267 = vmatpush.msra.mxu0 %v161
    %268 = vmatpush.msra.mxu0 %v157
    %269 = vmatmul.f32.gmra.mxu0 %v154
    %v270 = vpop.f32.mrf.mxu0
    %v271 = vadd.f32 %v223, %v270
    %272 = vmatmul.f32.gmra.mxu0 %v155
    %v273 = vpop.f32.mrf.mxu0
    %v274 = vadd.f32 %v223, %v273
    %275 = vdwg.mxu0
    %276 = vmatpush.msra.mxu0 %v218
    %277 = vmatpush.msra.mxu0 %v214
    %278 = vmatpush.msra.mxu0 %v210
    %279 = vmatpush.msra.mxu0 %v206
    %280 = vmatpush.msra.mxu0 %v202
    %281 = vmatpush.msra.mxu0 %v198
    %282 = vmatpush.msra.mxu0 %v194
    %283 = vmatpush.msra.mxu0 %v190
    %284 = vmatpush.msra.mxu0 %v186
    %285 = vmatpush.msra.mxu0 %v182
    %286 = vmatpush.msra.mxu0 %v178
    %287 = vmatpush.msra.mxu0 %v174
    %288 = vmatpush.msra.mxu0 %v170
    %289 = vmatpush.msra.mxu0 %v166
    %290 = vmatpush.msra.mxu0 %v162
    %291 = vmatpush.msra.mxu0 %v158
    %292 = vmatmul.f32.gmra.mxu0 %v154
    %v293 = vpop.f32.mrf.mxu0
    %v294 = vadd.f32 %v224, %v293
    %295 = vmatmul.f32.gmra.mxu0 %v155
    %v296 = vpop.f32.mrf.mxu0
    %v297 = vadd.f32 %v224, %v296
    %298 = vdwg.mxu0
    %299 = vmatpush.msra.mxu0 %v219
    %300 = vmatpush.msra.mxu0 %v215
    %301 = vmatpush.msra.mxu0 %v211
    %302 = vmatpush.msra.mxu0 %v207
    %303 = vmatpush.msra.mxu0 %v203
    %304 = vmatpush.msra.mxu0 %v199
    %305 = vmatpush.msra.mxu0 %v195
    %306 = vmatpush.msra.mxu0 %v191
    %307 = vmatpush.msra.mxu0 %v187
    %308 = vmatpush.msra.mxu0 %v183
    %309 = vmatpush.msra.mxu0 %v179
    %310 = vmatpush.msra.mxu0 %v175
    %311 = vmatpush.msra.mxu0 %v171
    %312 = vmatpush.msra.mxu0 %v167
    %313 = vmatpush.msra.mxu0 %v163
    %314 = vmatpush.msra.mxu0 %v159
    %315 = vmatmul.f32.gmra.mxu0 %v154
    %v316 = vpop.f32.mrf.mxu0
    %v317 = vadd.f32 %v225, %v316
    %318 = vmatmul.f32.gmra.mxu0 %v155
    %v319 = vpop.f32.mrf.mxu0
    %v320 = vadd.f32 %v225, %v319
    %321 = vdwg.mxu0
    %v322 = vmax.f32 %v248, 0.0
    %v323 = vmax.f32 %v271, 0.0
    %v324 = vmax.f32 %v294, 0.0
    %v325 = vmax.f32 %v317, 0.0
    %v326 = vmax.f32 %v251, 0.0
    %v327 = vmax.f32 %v274, 0.0
    %v328 = vmax.f32 %v297, 0.0
    %v329 = vmax.f32 %v320, 0.0
    %v330 = vld [vmem:[#allocation11] sm:$0xff]
    %v331 = vld [vmem:[#allocation11 + $0x8] sm:$0xff]
    %v332 = vld [vmem:[#allocation11 + $0x10] sm:$0xff]
    %v333 = vld [vmem:[#allocation11 + $0x18] sm:$0xff]
    %v334 = vld [vmem:[#allocation11 + $0x20] sm:$0xff]
    %v335 = vld [vmem:[#allocation11 + $0x28] sm:$0xff]
    %v336 = vld [vmem:[#allocation11 + $0x30] sm:$0xff]
    %v337 = vld [vmem:[#allocation11 + $0x38] sm:$0xff]
    %v338 = vld [vmem:[#allocation11 + $0x40] sm:$0xff]
    %v339 = vld [vmem:[#allocation11 + $0x48] sm:$0xff]
    %v340 = vld [vmem:[#allocation11 + $0x50] sm:$0xff]
    %v341 = vld [vmem:[#allocation11 + $0x58] sm:$0xff]
    %v342 = vld [vmem:[#allocation11 + $0x60] sm:$0xff]
    %v343 = vld [vmem:[#allocation11 + $0x68] sm:$0xff]
    %v344 = vld [vmem:[#allocation11 + $0x70] sm:$0xff]
    %v345 = vld [vmem:[#allocation11 + $0x78] sm:$0xff]
    %v346 = vld [vmem:[#allocation11 + $0x80] sm:$0xff]
    %v347 = vld [vmem:[#allocation11 + $0x88] sm:$0xff]
    %v348 = vld [vmem:[#allocation11 + $0x90] sm:$0xff]
    %v349 = vld [vmem:[#allocation11 + $0x98] sm:$0xff]
    %v350 = vld [vmem:[#allocation11 + $0xa0] sm:$0xff]
    %v351 = vld [vmem:[#allocation11 + $0xa8] sm:$0xff]
    %v352 = vld [vmem:[#allocation11 + $0xb0] sm:$0xff]
    %v353 = vld [vmem:[#allocation11 + $0xb8] sm:$0xff]
    %v354 = vld [vmem:[#allocation11 + $0xc0] sm:$0xff]
    %v355 = vld [vmem:[#allocation11 + $0xc8] sm:$0xff]
    %v356 = vld [vmem:[#allocation11 + $0xd0] sm:$0xff]
    %v357 = vld [vmem:[#allocation11 + $0xd8] sm:$0xff]
    %v358 = vld [vmem:[#allocation11 + $0xe0] sm:$0xff]
    %v359 = vld [vmem:[#allocation11 + $0xe8] sm:$0xff]
    %v360 = vld [vmem:[#allocation11 + $0xf0] sm:$0xff]
    %v361 = vld [vmem:[#allocation11 + $0xf8] sm:$0xff]
    %v362 = vld [vmem:[#allocation11 + $0x100] sm:$0xff]
    %v363 = vld [vmem:[#allocation11 + $0x108] sm:$0xff]
    %v364 = vld [vmem:[#allocation11 + $0x110] sm:$0xff]
    %v365 = vld [vmem:[#allocation11 + $0x118] sm:$0xff]
    %v366 = vld [vmem:[#allocation11 + $0x120] sm:$0xff]
    %v367 = vld [vmem:[#allocation11 + $0x128] sm:$0xff]
    %v368 = vld [vmem:[#allocation11 + $0x130] sm:$0xff]
    %v369 = vld [vmem:[#allocation11 + $0x138] sm:$0xff]
    %v370 = vld [vmem:[#allocation11 + $0x140] sm:$0xff]
    %v371 = vld [vmem:[#allocation11 + $0x148] sm:$0xff]
    %v372 = vld [vmem:[#allocation11 + $0x150] sm:$0xff]
    %v373 = vld [vmem:[#allocation11 + $0x158] sm:$0xff]
    %v374 = vld [vmem:[#allocation11 + $0x160] sm:$0xff]
    %v375 = vld [vmem:[#allocation11 + $0x168] sm:$0xff]
    %v376 = vld [vmem:[#allocation11 + $0x170] sm:$0xff]
    %v377 = vld [vmem:[#allocation11 + $0x178] sm:$0xff]
    %v378 = vld [vmem:[#allocation11 + $0x180] sm:$0xff]
    %v379 = vld [vmem:[#allocation11 + $0x188] sm:$0xff]
    %v380 = vld [vmem:[#allocation11 + $0x190] sm:$0xff]
    %v381 = vld [vmem:[#allocation11 + $0x198] sm:$0xff]
    %v382 = vld [vmem:[#allocation11 + $0x1a0] sm:$0xff]
    %v383 = vld [vmem:[#allocation11 + $0x1a8] sm:$0xff]
    %v384 = vld [vmem:[#allocation11 + $0x1b0] sm:$0xff]
    %v385 = vld [vmem:[#allocation11 + $0x1b8] sm:$0xff]
    %v386 = vld [vmem:[#allocation11 + $0x1c0] sm:$0xff]
    %v387 = vld [vmem:[#allocation11 + $0x1c8] sm:$0xff]
    %v388 = vld [vmem:[#allocation11 + $0x1d0] sm:$0xff]
    %v389 = vld [vmem:[#allocation11 + $0x1d8] sm:$0xff]
    %v390 = vld [vmem:[#allocation11 + $0x1e0] sm:$0xff]
    %v391 = vld [vmem:[#allocation11 + $0x1e8] sm:$0xff]
    %v392 = vld [vmem:[#allocation11 + $0x1f0] sm:$0xff]
    %v393 = vld [vmem:[#allocation11 + $0x1f8] sm:$0xff]
    %v394 = vld [vmem:[#allocation8 + $0x20] sm:$0xff]
    %v395 = vld [vmem:[#allocation8 + $0x28] sm:$0xff]
    %v396 = vld [vmem:[#allocation8 + $0x30] sm:$0xff]
    %v397 = vld [vmem:[#allocation8 + $0x38] sm:$0xff]
    %v398 = vld [vmem:[#allocation8 + $0xa0] sm:$0xff]
    %v399 = vld [vmem:[#allocation8 + $0xa8] sm:$0xff]
    %v400 = vld [vmem:[#allocation8 + $0xb0] sm:$0xff]
    %v401 = vld [vmem:[#allocation8 + $0xb8] sm:$0xff]
    %v402 = vld [vmem:[#allocation8 + $0x120] sm:$0xff]
    %v403 = vld [vmem:[#allocation8 + $0x128] sm:$0xff]
    %v404 = vld [vmem:[#allocation8 + $0x130] sm:$0xff]
    %v405 = vld [vmem:[#allocation8 + $0x138] sm:$0xff]
    %v406 = vld [vmem:[#allocation8 + $0x1a0] sm:$0xff]
    %v407 = vld [vmem:[#allocation8 + $0x1a8] sm:$0xff]
    %v408 = vld [vmem:[#allocation8 + $0x1b0] sm:$0xff]
    %v409 = vld [vmem:[#allocation8 + $0x1b8] sm:$0xff]
    %v410 = vld [vmem:[#allocation8 + $0x220] sm:$0xff]
    %v411 = vld [vmem:[#allocation8 + $0x228] sm:$0xff]
    %v412 = vld [vmem:[#allocation8 + $0x230] sm:$0xff]
    %v413 = vld [vmem:[#allocation8 + $0x238] sm:$0xff]
    %v414 = vld [vmem:[#allocation8 + $0x2a0] sm:$0xff]
    %v415 = vld [vmem:[#allocation8 + $0x2a8] sm:$0xff]
    %v416 = vld [vmem:[#allocation8 + $0x2b0] sm:$0xff]
    %v417 = vld [vmem:[#allocation8 + $0x2b8] sm:$0xff]
    %v418 = vld [vmem:[#allocation8 + $0x320] sm:$0xff]
    %v419 = vld [vmem:[#allocation8 + $0x328] sm:$0xff]
    %v420 = vld [vmem:[#allocation8 + $0x330] sm:$0xff]
    %v421 = vld [vmem:[#allocation8 + $0x338] sm:$0xff]
    %v422 = vld [vmem:[#allocation8 + $0x3a0] sm:$0xff]
    %v423 = vld [vmem:[#allocation8 + $0x3a8] sm:$0xff]
    %v424 = vld [vmem:[#allocation8 + $0x3b0] sm:$0xff]
    %v425 = vld [vmem:[#allocation8 + $0x3b8] sm:$0xff]
    %v426 = vld [vmem:[#allocation8 + $0x420] sm:$0xff]
    %v427 = vld [vmem:[#allocation8 + $0x428] sm:$0xff]
    %v428 = vld [vmem:[#allocation8 + $0x430] sm:$0xff]
    %v429 = vld [vmem:[#allocation8 + $0x438] sm:$0xff]
    %v430 = vld [vmem:[#allocation8 + $0x4a0] sm:$0xff]
    %v431 = vld [vmem:[#allocation8 + $0x4a8] sm:$0xff]
    %v432 = vld [vmem:[#allocation8 + $0x4b0] sm:$0xff]
    %v433 = vld [vmem:[#allocation8 + $0x4b8] sm:$0xff]
    %v434 = vld [vmem:[#allocation8 + $0x520] sm:$0xff]
    %v435 = vld [vmem:[#allocation8 + $0x528] sm:$0xff]
    %v436 = vld [vmem:[#allocation8 + $0x530] sm:$0xff]
    %v437 = vld [vmem:[#allocation8 + $0x538] sm:$0xff]
    %v438 = vld [vmem:[#allocation8 + $0x5a0] sm:$0xff]
    %v439 = vld [vmem:[#allocation8 + $0x5a8] sm:$0xff]
    %v440 = vld [vmem:[#allocation8 + $0x5b0] sm:$0xff]
    %v441 = vld [vmem:[#allocation8 + $0x5b8] sm:$0xff]
    %v442 = vld [vmem:[#allocation8 + $0x620] sm:$0xff]
    %v443 = vld [vmem:[#allocation8 + $0x628] sm:$0xff]
    %v444 = vld [vmem:[#allocation8 + $0x630] sm:$0xff]
    %v445 = vld [vmem:[#allocation8 + $0x638] sm:$0xff]
    %v446 = vld [vmem:[#allocation8 + $0x6a0] sm:$0xff]
    %v447 = vld [vmem:[#allocation8 + $0x6a8] sm:$0xff]
    %v448 = vld [vmem:[#allocation8 + $0x6b0] sm:$0xff]
    %v449 = vld [vmem:[#allocation8 + $0x6b8] sm:$0xff]
    %v450 = vld [vmem:[#allocation8 + $0x720] sm:$0xff]
    %v451 = vld [vmem:[#allocation8 + $0x728] sm:$0xff]
    %v452 = vld [vmem:[#allocation8 + $0x730] sm:$0xff]
    %v453 = vld [vmem:[#allocation8 + $0x738] sm:$0xff]
    %v454 = vld [vmem:[#allocation8 + $0x7a0] sm:$0xff]
    %v455 = vld [vmem:[#allocation8 + $0x7a8] sm:$0xff]
    %v456 = vld [vmem:[#allocation8 + $0x7b0] sm:$0xff]
    %v457 = vld [vmem:[#allocation8 + $0x7b8] sm:$0xff]
    %v458 = vld [vmem:[#allocation9 + $0x4] sm:$0xf]
    %v460 = vperm.slane %v458, 0
    %v461 = vperm.slane %v458, 1
    %v462 = vperm.slane %v458, 2
    %v463 = vperm.slane %v458, 3
    %468 = vmatpush.msra.mxu0 %v454
    %469 = vmatpush.msra.mxu0 %v450
    %470 = vmatpush.msra.mxu0 %v446
    %471 = vmatpush.msra.mxu0 %v442
    %472 = vmatpush.msra.mxu0 %v438
    %473 = vmatpush.msra.mxu0 %v434
    %474 = vmatpush.msra.mxu0 %v430
    %475 = vmatpush.msra.mxu0 %v426
    %476 = vmatpush.msra.mxu0 %v422
    %477 = vmatpush.msra.mxu0 %v418
    %478 = vmatpush.msra.mxu0 %v414
    %479 = vmatpush.msra.mxu0 %v410
    %480 = vmatpush.msra.mxu0 %v406
    %481 = vmatpush.msra.mxu0 %v402
    %482 = vmatpush.msra.mxu0 %v398
    %483 = vmatpush.msra.mxu0 %v394
    %484 = vmatmul.f32.gmra.mxu0 %v154
    %v485 = vpop.f32.mrf.mxu0
    %v486 = vadd.f32 %v460, %v485
    %487 = vmatmul.f32.gmra.mxu0 %v155
    %v488 = vpop.f32.mrf.mxu0
    %v489 = vadd.f32 %v460, %v488
    %490 = vdwg.mxu0
    %491 = vmatpush.msra.mxu0 %v455
    %492 = vmatpush.msra.mxu0 %v451
    %493 = vmatpush.msra.mxu0 %v447
    %494 = vmatpush.msra.mxu0 %v443
    %495 = vmatpush.msra.mxu0 %v439
    %496 = vmatpush.msra.mxu0 %v435
    %497 = vmatpush.msra.mxu0 %v431
    %498 = vmatpush.msra.mxu0 %v427
    %499 = vmatpush.msra.mxu0 %v423
    %500 = vmatpush.msra.mxu0 %v419
    %501 = vmatpush.msra.mxu0 %v415
    %502 = vmatpush.msra.mxu0 %v411
    %503 = vmatpush.msra.mxu0 %v407
    %504 = vmatpush.msra.mxu0 %v403
    %505 = vmatpush.msra.mxu0 %v399
    %506 = vmatpush.msra.mxu0 %v395
    %507 = vmatmul.f32.gmra.mxu0 %v154
    %v508 = vpop.f32.mrf.mxu0
    %v509 = vadd.f32 %v461, %v508
    %510 = vmatmul.f32.gmra.mxu0 %v155
    %v511 = vpop.f32.mrf.mxu0
    %v512 = vadd.f32 %v461, %v511
    %513 = vdwg.mxu0
    %514 = vmatpush.msra.mxu0 %v456
    %515 = vmatpush.msra.mxu0 %v452
    %516 = vmatpush.msra.mxu0 %v448
    %517 = vmatpush.msra.mxu0 %v444
    %518 = vmatpush.msra.mxu0 %v440
    %519 = vmatpush.msra.mxu0 %v436
    %520 = vmatpush.msra.mxu0 %v432
    %521 = vmatpush.msra.mxu0 %v428
    %522 = vmatpush.msra.mxu0 %v424
    %523 = vmatpush.msra.mxu0 %v420
    %524 = vmatpush.msra.mxu0 %v416
    %525 = vmatpush.msra.mxu0 %v412
    %526 = vmatpush.msra.mxu0 %v408
    %527 = vmatpush.msra.mxu0 %v404
    %528 = vmatpush.msra.mxu0 %v400
    %529 = vmatpush.msra.mxu0 %v396
    %530 = vmatmul.f32.gmra.mxu0 %v154
    %v531 = vpop.f32.mrf.mxu0
    %v532 = vadd.f32 %v462, %v531
    %533 = vmatmul.f32.gmra.mxu0 %v155
    %v534 = vpop.f32.mrf.mxu0
    %v535 = vadd.f32 %v462, %v534
    %536 = vdwg.mxu0
    %537 = vmatpush.msra.mxu0 %v457
    %538 = vmatpush.msra.mxu0 %v453
    %539 = vmatpush.msra.mxu0 %v449
    %540 = vmatpush.msra.mxu0 %v445
    %541 = vmatpush.msra.mxu0 %v441
    %542 = vmatpush.msra.mxu0 %v437
    %543 = vmatpush.msra.mxu0 %v433
    %544 = vmatpush.msra.mxu0 %v429
    %545 = vmatpush.msra.mxu0 %v425
    %546 = vmatpush.msra.mxu0 %v421
    %547 = vmatpush.msra.mxu0 %v417
    %548 = vmatpush.msra.mxu0 %v413
    %549 = vmatpush.msra.mxu0 %v409
    %550 = vmatpush.msra.mxu0 %v405
    %551 = vmatpush.msra.mxu0 %v401
    %552 = vmatpush.msra.mxu0 %v397
    %553 = vmatmul.f32.gmra.mxu0 %v154
    %v554 = vpop.f32.mrf.mxu0
    %v555 = vadd.f32 %v463, %v554
    %556 = vmatmul.f32.gmra.mxu0 %v155
    %v557 = vpop.f32.mrf.mxu0
    %v558 = vadd.f32 %v463, %v557
    %559 = vdwg.mxu0
    %v560 = vmax.f32 %v486, 0.0
    %v561 = vmax.f32 %v509, 0.0
    %v562 = vmax.f32 %v532, 0.0
    %v563 = vmax.f32 %v555, 0.0
    %v564 = vmax.f32 %v489, 0.0
    %v565 = vmax.f32 %v512, 0.0
    %v566 = vmax.f32 %v535, 0.0
    %v567 = vmax.f32 %v558, 0.0
    %v568 = vld [vmem:[#allocation11 + $0x200] sm:$0xff]
    %v569 = vld [vmem:[#allocation11 + $0x208] sm:$0xff]
    %v570 = vld [vmem:[#allocation11 + $0x210] sm:$0xff]
    %v571 = vld [vmem:[#allocation11 + $0x218] sm:$0xff]
    %v572 = vld [vmem:[#allocation11 + $0x220] sm:$0xff]
    %v573 = vld [vmem:[#allocation11 + $0x228] sm:$0xff]
    %v574 = vld [vmem:[#allocation11 + $0x230] sm:$0xff]
    %v575 = vld [vmem:[#allocation11 + $0x238] sm:$0xff]
    %v576 = vld [vmem:[#allocation11 + $0x240] sm:$0xff]
    %v577 = vld [vmem:[#allocation11 + $0x248] sm:$0xff]
    %v578 = vld [vmem:[#allocation11 + $0x250] sm:$0xff]
    %v579 = vld [vmem:[#allocation11 + $0x258] sm:$0xff]
    %v580 = vld [vmem:[#allocation11 + $0x260] sm:$0xff]
    %v581 = vld [vmem:[#allocation11 + $0x268] sm:$0xff]
    %v582 = vld [vmem:[#allocation11 + $0x270] sm:$0xff]
    %v583 = vld [vmem:[#allocation11 + $0x278] sm:$0xff]
    %v584 = vld [vmem:[#allocation11 + $0x280] sm:$0xff]
    %v585 = vld [vmem:[#allocation11 + $0x288] sm:$0xff]
    %v586 = vld [vmem:[#allocation11 + $0x290] sm:$0xff]
    %v587 = vld [vmem:[#allocation11 + $0x298] sm:$0xff]
    %v588 = vld [vmem:[#allocation11 + $0x2a0] sm:$0xff]
    %v589 = vld [vmem:[#allocation11 + $0x2a8] sm:$0xff]
    %v590 = vld [vmem:[#allocation11 + $0x2b0] sm:$0xff]
    %v591 = vld [vmem:[#allocation11 + $0x2b8] sm:$0xff]
    %v592 = vld [vmem:[#allocation11 + $0x2c0] sm:$0xff]
    %v593 = vld [vmem:[#allocation11 + $0x2c8] sm:$0xff]
    %v594 = vld [vmem:[#allocation11 + $0x2d0] sm:$0xff]
    %v595 = vld [vmem:[#allocation11 + $0x2d8] sm:$0xff]
    %v596 = vld [vmem:[#allocation11 + $0x2e0] sm:$0xff]
    %v597 = vld [vmem:[#allocation11 + $0x2e8] sm:$0xff]
    %v598 = vld [vmem:[#allocation11 + $0x2f0] sm:$0xff]
    %v599 = vld [vmem:[#allocation11 + $0x2f8] sm:$0xff]
    %v600 = vld [vmem:[#allocation11 + $0x300] sm:$0xff]
    %v601 = vld [vmem:[#allocation11 + $0x308] sm:$0xff]
    %v602 = vld [vmem:[#allocation11 + $0x310] sm:$0xff]
    %v603 = vld [vmem:[#allocation11 + $0x318] sm:$0xff]
    %v604 = vld [vmem:[#allocation11 + $0x320] sm:$0xff]
    %v605 = vld [vmem:[#allocation11 + $0x328] sm:$0xff]
    %v606 = vld [vmem:[#allocation11 + $0x330] sm:$0xff]
    %v607 = vld [vmem:[#allocation11 + $0x338] sm:$0xff]
    %v608 = vld [vmem:[#allocation11 + $0x340] sm:$0xff]
    %v609 = vld [vmem:[#allocation11 + $0x348] sm:$0xff]
    %v610 = vld [vmem:[#allocation11 + $0x350] sm:$0xff]
    %v611 = vld [vmem:[#allocation11 + $0x358] sm:$0xff]
    %v612 = vld [vmem:[#allocation11 + $0x360] sm:$0xff]
    %v613 = vld [vmem:[#allocation11 + $0x368] sm:$0xff]
    %v614 = vld [vmem:[#allocation11 + $0x370] sm:$0xff]
    %v615 = vld [vmem:[#allocation11 + $0x378] sm:$0xff]
    %v616 = vld [vmem:[#allocation11 + $0x380] sm:$0xff]
    %v617 = vld [vmem:[#allocation11 + $0x388] sm:$0xff]
    %v618 = vld [vmem:[#allocation11 + $0x390] sm:$0xff]
    %v619 = vld [vmem:[#allocation11 + $0x398] sm:$0xff]
    %v620 = vld [vmem:[#allocation11 + $0x3a0] sm:$0xff]
    %v621 = vld [vmem:[#allocation11 + $0x3a8] sm:$0xff]
    %v622 = vld [vmem:[#allocation11 + $0x3b0] sm:$0xff]
    %v623 = vld [vmem:[#allocation11 + $0x3b8] sm:$0xff]
    %v624 = vld [vmem:[#allocation11 + $0x3c0] sm:$0xff]
    %v625 = vld [vmem:[#allocation11 + $0x3c8] sm:$0xff]
    %v626 = vld [vmem:[#allocation11 + $0x3d0] sm:$0xff]
    %v627 = vld [vmem:[#allocation11 + $0x3d8] sm:$0xff]
    %v628 = vld [vmem:[#allocation11 + $0x3e0] sm:$0xff]
    %v629 = vld [vmem:[#allocation11 + $0x3e8] sm:$0xff]
    %v630 = vld [vmem:[#allocation11 + $0x3f0] sm:$0xff]
    %v631 = vld [vmem:[#allocation11 + $0x3f8] sm:$0xff]
    %632 = vmatpush.msra.mxu0 %v583
    %633 = vmatpush.msra.mxu0 %v582
    %634 = vmatpush.msra.mxu0 %v581
    %635 = vmatpush.msra.mxu0 %v580
    %636 = vmatpush.msra.mxu0 %v579
    %637 = vmatpush.msra.mxu0 %v578
    %638 = vmatpush.msra.mxu0 %v577
    %639 = vmatpush.msra.mxu0 %v576
    %640 = vmatpush.msra.mxu0 %v575
    %641 = vmatpush.msra.mxu0 %v574
    %642 = vmatpush.msra.mxu0 %v573
    %643 = vmatpush.msra.mxu0 %v572
    %644 = vmatpush.msra.mxu0 %v571
    %645 = vmatpush.msra.mxu0 %v570
    %646 = vmatpush.msra.mxu0 %v569
    %647 = vmatpush.msra.mxu0 %v568
    %648 = vmatmul.f32.gmra.mxu0 %v560
    %v649 = vpop.f32.mrf.mxu0
    %v650 = vadd.f32 0.0, %v649
    %651 = vmatmul.f32.gmra.mxu0 %v564
    %v652 = vpop.f32.mrf.mxu0
    %v653 = vadd.f32 0.0, %v652
    %654 = vdwg.mxu0
    %655 = vmatpush.msra.mxu0 %v599
    %656 = vmatpush.msra.mxu0 %v598
    %657 = vmatpush.msra.mxu0 %v597
    %658 = vmatpush.msra.mxu0 %v596
    %659 = vmatpush.msra.mxu0 %v595
    %660 = vmatpush.msra.mxu0 %v594
    %661 = vmatpush.msra.mxu0 %v593
    %662 = vmatpush.msra.mxu0 %v592
    %663 = vmatpush.msra.mxu0 %v591
    %664 = vmatpush.msra.mxu0 %v590
    %665 = vmatpush.msra.mxu0 %v589
    %666 = vmatpush.msra.mxu0 %v588
    %667 = vmatpush.msra.mxu0 %v587
    %668 = vmatpush.msra.mxu0 %v586
    %669 = vmatpush.msra.mxu0 %v585
    %670 = vmatpush.msra.mxu0 %v584
    %671 = vmatmul.f32.gmra.mxu0 %v561
    %v672 = vpop.f32.mrf.mxu0
    %v673 = vadd.f32 %v650, %v672
    %674 = vmatmul.f32.gmra.mxu0 %v565
    %v675 = vpop.f32.mrf.mxu0
    %v676 = vadd.f32 %v653, %v675
    %677 = vdwg.mxu0
    %678 = vmatpush.msra.mxu0 %v615
    %679 = vmatpush.msra.mxu0 %v614
    %680 = vmatpush.msra.mxu0 %v613
    %681 = vmatpush.msra.mxu0 %v612
    %682 = vmatpush.msra.mxu0 %v611
    %683 = vmatpush.msra.mxu0 %v610
    %684 = vmatpush.msra.mxu0 %v609
    %685 = vmatpush.msra.mxu0 %v608
    %686 = vmatpush.msra.mxu0 %v607
    %687 = vmatpush.msra.mxu0 %v606
    %688 = vmatpush.msra.mxu0 %v605
    %689 = vmatpush.msra.mxu0 %v604
    %690 = vmatpush.msra.mxu0 %v603
    %691 = vmatpush.msra.mxu0 %v602
    %692 = vmatpush.msra.mxu0 %v601
    %693 = vmatpush.msra.mxu0 %v600
    %694 = vmatmul.f32.gmra.mxu0 %v562
    %v695 = vpop.f32.mrf.mxu0
    %v696 = vadd.f32 %v673, %v695
    %697 = vmatmul.f32.gmra.mxu0 %v566
    %v698 = vpop.f32.mrf.mxu0
    %v699 = vadd.f32 %v676, %v698
    %700 = vdwg.mxu0
    %701 = vmatpush.msra.mxu0 %v631
    %702 = vmatpush.msra.mxu0 %v630
    %703 = vmatpush.msra.mxu0 %v629
    %704 = vmatpush.msra.mxu0 %v628
    %705 = vmatpush.msra.mxu0 %v627
    %706 = vmatpush.msra.mxu0 %v626
    %707 = vmatpush.msra.mxu0 %v625
    %708 = vmatpush.msra.mxu0 %v624
    %709 = vmatpush.msra.mxu0 %v623
    %710 = vmatpush.msra.mxu0 %v622
    %711 = vmatpush.msra.mxu0 %v621
    %712 = vmatpush.msra.mxu0 %v620
    %713 = vmatpush.msra.mxu0 %v619
    %714 = vmatpush.msra.mxu0 %v618
    %715 = vmatpush.msra.mxu0 %v617
    %716 = vmatpush.msra.mxu0 %v616
    %717 = vmatmul.f32.gmra.mxu0 %v563
    %v718 = vpop.f32.mrf.mxu0
    %v719 = vadd.f32 %v696, %v718
    %720 = vmatmul.f32.gmra.mxu0 %v567
    %v721 = vpop.f32.mrf.mxu0
    %v722 = vadd.f32 %v699, %v721
    %723 = vdwg.mxu0
    %724 = vmatpush.msra.mxu0 %v345
    %725 = vmatpush.msra.mxu0 %v344
    %726 = vmatpush.msra.mxu0 %v343
    %727 = vmatpush.msra.mxu0 %v342
    %728 = vmatpush.msra.mxu0 %v341
    %729 = vmatpush.msra.mxu0 %v340
    %730 = vmatpush.msra.mxu0 %v339
    %731 = vmatpush.msra.mxu0 %v338
    %732 = vmatpush.msra.mxu0 %v337
    %733 = vmatpush.msra.mxu0 %v336
    %734 = vmatpush.msra.mxu0 %v335
    %735 = vmatpush.msra.mxu0 %v334
    %736 = vmatpush.msra.mxu0 %v333
    %737 = vmatpush.msra.mxu0 %v332
    %738 = vmatpush.msra.mxu0 %v331
    %739 = vmatpush.msra.mxu0 %v330
    %740 = vmatmul.f32.gmra.mxu0 %v322
    %v741 = vpop.f32.mrf.mxu0
    %v742 = vadd.f32 %v719, %v741
    %743 = vmatmul.f32.gmra.mxu0 %v326
    %v744 = vpop.f32.mrf.mxu0
    %v745 = vadd.f32 %v722, %v744
    %746 = vdwg.mxu0
    %747 = vmatpush.msra.mxu0 %v361
    %748 = vmatpush.msra.mxu0 %v360
    %749 = vmatpush.msra.mxu0 %v359
    %750 = vmatpush.msra.mxu0 %v358
    %751 = vmatpush.msra.mxu0 %v357
    %752 = vmatpush.msra.mxu0 %v356
    %753 = vmatpush.msra.mxu0 %v355
    %754 = vmatpush.msra.mxu0 %v354
    %755 = vmatpush.msra.mxu0 %v353
    %756 = vmatpush.msra.mxu0 %v352
    %757 = vmatpush.msra.mxu0 %v351
    %758 = vmatpush.msra.mxu0 %v350
    %759 = vmatpush.msra.mxu0 %v349
    %760 = vmatpush.msra.mxu0 %v348
    %761 = vmatpush.msra.mxu0 %v347
    %762 = vmatpush.msra.mxu0 %v346
    %763 = vmatmul.f32.gmra.mxu0 %v323
    %v764 = vpop.f32.mrf.mxu0
    %v765 = vadd.f32 %v742, %v764
    %766 = vmatmul.f32.gmra.mxu0 %v327
    %v767 = vpop.f32.mrf.mxu0
    %v768 = vadd.f32 %v745, %v767
    %769 = vdwg.mxu0
    %770 = vmatpush.msra.mxu0 %v377
    %771 = vmatpush.msra.mxu0 %v376
    %772 = vmatpush.msra.mxu0 %v375
    %773 = vmatpush.msra.mxu0 %v374
    %774 = vmatpush.msra.mxu0 %v373
    %775 = vmatpush.msra.mxu0 %v372
    %776 = vmatpush.msra.mxu0 %v371
    %777 = vmatpush.msra.mxu0 %v370
    %778 = vmatpush.msra.mxu0 %v369
    %779 = vmatpush.msra.mxu0 %v368
    %780 = vmatpush.msra.mxu0 %v367
    %781 = vmatpush.msra.mxu0 %v366
    %782 = vmatpush.msra.mxu0 %v365
    %783 = vmatpush.msra.mxu0 %v364
    %784 = vmatpush.msra.mxu0 %v363
    %785 = vmatpush.msra.mxu0 %v362
    %786 = vmatmul.f32.gmra.mxu0 %v324
    %v787 = vpop.f32.mrf.mxu0
    %v788 = vadd.f32 %v765, %v787
    %789 = vmatmul.f32.gmra.mxu0 %v328
    %v790 = vpop.f32.mrf.mxu0
    %v791 = vadd.f32 %v768, %v790
    %792 = vdwg.mxu0
    %793 = vmatpush.msra.mxu0 %v393
    %794 = vmatpush.msra.mxu0 %v392
    %795 = vmatpush.msra.mxu0 %v391
    %796 = vmatpush.msra.mxu0 %v390
    %797 = vmatpush.msra.mxu0 %v389
    %798 = vmatpush.msra.mxu0 %v388
    %799 = vmatpush.msra.mxu0 %v387
    %800 = vmatpush.msra.mxu0 %v386
    %801 = vmatpush.msra.mxu0 %v385
    %802 = vmatpush.msra.mxu0 %v384
    %803 = vmatpush.msra.mxu0 %v383
    %804 = vmatpush.msra.mxu0 %v382
    %805 = vmatpush.msra.mxu0 %v381
    %806 = vmatpush.msra.mxu0 %v380
    %807 = vmatpush.msra.mxu0 %v379
    %808 = vmatpush.msra.mxu0 %v378
    %809 = vmatmul.f32.gmra.mxu0 %v325
    %v810 = vpop.f32.mrf.mxu0
    %v811 = vadd.f32 %v788, %v810
    %812 = vmatmul.f32.gmra.mxu0 %v329
    %v813 = vpop.f32.mrf.mxu0
    %v814 = vadd.f32 %v791, %v813
    %815 = vdwg.mxu0
    %v816 = vld [vmem:[#allocation8 + $0x40] sm:$0xff]
    %v817 = vld [vmem:[#allocation8 + $0x48] sm:$0xff]
    %v818 = vld [vmem:[#allocation8 + $0x50] sm:$0xff]
    %v819 = vld [vmem:[#allocation8 + $0x58] sm:$0xff]
    %v820 = vld [vmem:[#allocation8 + $0xc0] sm:$0xff]
    %v821 = vld [vmem:[#allocation8 + $0xc8] sm:$0xff]
    %v822 = vld [vmem:[#allocation8 + $0xd0] sm:$0xff]
    %v823 = vld [vmem:[#allocation8 + $0xd8] sm:$0xff]
    %v824 = vld [vmem:[#allocation8 + $0x140] sm:$0xff]
    %v825 = vld [vmem:[#allocation8 + $0x148] sm:$0xff]
    %v826 = vld [vmem:[#allocation8 + $0x150] sm:$0xff]
    %v827 = vld [vmem:[#allocation8 + $0x158] sm:$0xff]
    %v828 = vld [vmem:[#allocation8 + $0x1c0] sm:$0xff]
    %v829 = vld [vmem:[#allocation8 + $0x1c8] sm:$0xff]
    %v830 = vld [vmem:[#allocation8 + $0x1d0] sm:$0xff]
    %v831 = vld [vmem:[#allocation8 + $0x1d8] sm:$0xff]
    %v832 = vld [vmem:[#allocation8 + $0x240] sm:$0xff]
    %v833 = vld [vmem:[#allocation8 + $0x248] sm:$0xff]
    %v834 = vld [vmem:[#allocation8 + $0x250] sm:$0xff]
    %v835 = vld [vmem:[#allocation8 + $0x258] sm:$0xff]
    %v836 = vld [vmem:[#allocation8 + $0x2c0] sm:$0xff]
    %v837 = vld [vmem:[#allocation8 + $0x2c8] sm:$0xff]
    %v838 = vld [vmem:[#allocation8 + $0x2d0] sm:$0xff]
    %v839 = vld [vmem:[#allocation8 + $0x2d8] sm:$0xff]
    %v840 = vld [vmem:[#allocation8 + $0x340] sm:$0xff]
    %v841 = vld [vmem:[#allocation8 + $0x348] sm:$0xff]
    %v842 = vld [vmem:[#allocation8 + $0x350] sm:$0xff]
    %v843 = vld [vmem:[#allocation8 + $0x358] sm:$0xff]
    %v844 = vld [vmem:[#allocation8 + $0x3c0] sm:$0xff]
    %v845 = vld [vmem:[#allocation8 + $0x3c8] sm:$0xff]
    %v846 = vld [vmem:[#allocation8 + $0x3d0] sm:$0xff]
    %v847 = vld [vmem:[#allocation8 + $0x3d8] sm:$0xff]
    %v848 = vld [vmem:[#allocation8 + $0x440] sm:$0xff]
    %v849 = vld [vmem:[#allocation8 + $0x448] sm:$0xff]
    %v850 = vld [vmem:[#allocation8 + $0x450] sm:$0xff]
    %v851 = vld [vmem:[#allocation8 + $0x458] sm:$0xff]
    %v852 = vld [vmem:[#allocation8 + $0x4c0] sm:$0xff]
    %v853 = vld [vmem:[#allocation8 + $0x4c8] sm:$0xff]
    %v854 = vld [vmem:[#allocation8 + $0x4d0] sm:$0xff]
    %v855 = vld [vmem:[#allocation8 + $0x4d8] sm:$0xff]
    %v856 = vld [vmem:[#allocation8 + $0x540] sm:$0xff]
    %v857 = vld [vmem:[#allocation8 + $0x548] sm:$0xff]
    %v858 = vld [vmem:[#allocation8 + $0x550] sm:$0xff]
    %v859 = vld [vmem:[#allocation8 + $0x558] sm:$0xff]
    %v860 = vld [vmem:[#allocation8 + $0x5c0] sm:$0xff]
    %v861 = vld [vmem:[#allocation8 + $0x5c8] sm:$0xff]
    %v862 = vld [vmem:[#allocation8 + $0x5d0] sm:$0xff]
    %v863 = vld [vmem:[#allocation8 + $0x5d8] sm:$0xff]
    %v864 = vld [vmem:[#allocation8 + $0x640] sm:$0xff]
    %v865 = vld [vmem:[#allocation8 + $0x648] sm:$0xff]
    %v866 = vld [vmem:[#allocation8 + $0x650] sm:$0xff]
    %v867 = vld [vmem:[#allocation8 + $0x658] sm:$0xff]
    %v868 = vld [vmem:[#allocation8 + $0x6c0] sm:$0xff]
    %v869 = vld [vmem:[#allocation8 + $0x6c8] sm:$0xff]
    %v870 = vld [vmem:[#allocation8 + $0x6d0] sm:$0xff]
    %v871 = vld [vmem:[#allocation8 + $0x6d8] sm:$0xff]
    %v872 = vld [vmem:[#allocation8 + $0x740] sm:$0xff]
    %v873 = vld [vmem:[#allocation8 + $0x748] sm:$0xff]
    %v874 = vld [vmem:[#allocation8 + $0x750] sm:$0xff]
    %v875 = vld [vmem:[#allocation8 + $0x758] sm:$0xff]
    %v876 = vld [vmem:[#allocation8 + $0x7c0] sm:$0xff]
    %v877 = vld [vmem:[#allocation8 + $0x7c8] sm:$0xff]
    %v878 = vld [vmem:[#allocation8 + $0x7d0] sm:$0xff]
    %v879 = vld [vmem:[#allocation8 + $0x7d8] sm:$0xff]
    %v880 = vld [vmem:[#allocation9 + $0x8] sm:$0xf]
    %v882 = vperm.slane %v880, 0
    %v883 = vperm.slane %v880, 1
    %v884 = vperm.slane %v880, 2
    %v885 = vperm.slane %v880, 3
    %890 = vmatpush.msra.mxu0 %v876
    %891 = vmatpush.msra.mxu0 %v872
    %892 = vmatpush.msra.mxu0 %v868
    %893 = vmatpush.msra.mxu0 %v864
    %894 = vmatpush.msra.mxu0 %v860
    %895 = vmatpush.msra.mxu0 %v856
    %896 = vmatpush.msra.mxu0 %v852
    %897 = vmatpush.msra.mxu0 %v848
    %898 = vmatpush.msra.mxu0 %v844
    %899 = vmatpush.msra.mxu0 %v840
    %900 = vmatpush.msra.mxu0 %v836
    %901 = vmatpush.msra.mxu0 %v832
    %902 = vmatpush.msra.mxu0 %v828
    %903 = vmatpush.msra.mxu0 %v824
    %904 = vmatpush.msra.mxu0 %v820
    %905 = vmatpush.msra.mxu0 %v816
    %906 = vmatmul.f32.gmra.mxu0 %v154
    %v907 = vpop.f32.mrf.mxu0
    %v908 = vadd.f32 %v882, %v907
    %909 = vmatmul.f32.gmra.mxu0 %v155
    %v910 = vpop.f32.mrf.mxu0
    %v911 = vadd.f32 %v882, %v910
    %912 = vdwg.mxu0
    %913 = vmatpush.msra.mxu0 %v877
    %914 = vmatpush.msra.mxu0 %v873
    %915 = vmatpush.msra.mxu0 %v869
    %916 = vmatpush.msra.mxu0 %v865
    %917 = vmatpush.msra.mxu0 %v861
    %918 = vmatpush.msra.mxu0 %v857
    %919 = vmatpush.msra.mxu0 %v853
    %920 = vmatpush.msra.mxu0 %v849
    %921 = vmatpush.msra.mxu0 %v845
    %922 = vmatpush.msra.mxu0 %v841
    %923 = vmatpush.msra.mxu0 %v837
    %924 = vmatpush.msra.mxu0 %v833
    %925 = vmatpush.msra.mxu0 %v829
    %926 = vmatpush.msra.mxu0 %v825
    %927 = vmatpush.msra.mxu0 %v821
    %928 = vmatpush.msra.mxu0 %v817
    %929 = vmatmul.f32.gmra.mxu0 %v154
    %v930 = vpop.f32.mrf.mxu0
    %v931 = vadd.f32 %v883, %v930
    %932 = vmatmul.f32.gmra.mxu0 %v155
    %v933 = vpop.f32.mrf.mxu0
    %v934 = vadd.f32 %v883, %v933
    %935 = vdwg.mxu0
    %936 = vmatpush.msra.mxu0 %v878
    %937 = vmatpush.msra.mxu0 %v874
    %938 = vmatpush.msra.mxu0 %v870
    %939 = vmatpush.msra.mxu0 %v866
    %940 = vmatpush.msra.mxu0 %v862
    %941 = vmatpush.msra.mxu0 %v858
    %942 = vmatpush.msra.mxu0 %v854
    %943 = vmatpush.msra.mxu0 %v850
    %944 = vmatpush.msra.mxu0 %v846
    %945 = vmatpush.msra.mxu0 %v842
    %946 = vmatpush.msra.mxu0 %v838
    %947 = vmatpush.msra.mxu0 %v834
    %948 = vmatpush.msra.mxu0 %v830
    %949 = vmatpush.msra.mxu0 %v826
    %950 = vmatpush.msra.mxu0 %v822
    %951 = vmatpush.msra.mxu0 %v818
    %952 = vmatmul.f32.gmra.mxu0 %v154
    %v953 = vpop.f32.mrf.mxu0
    %v954 = vadd.f32 %v884, %v953
    %955 = vmatmul.f32.gmra.mxu0 %v155
    %v956 = vpop.f32.mrf.mxu0
    %v957 = vadd.f32 %v884, %v956
    %958 = vdwg.mxu0
    %959 = vmatpush.msra.mxu0 %v879
    %960 = vmatpush.msra.mxu0 %v875
    %961 = vmatpush.msra.mxu0 %v871
    %962 = vmatpush.msra.mxu0 %v867
    %963 = vmatpush.msra.mxu0 %v863
    %964 = vmatpush.msra.mxu0 %v859
    %965 = vmatpush.msra.mxu0 %v855
    %966 = vmatpush.msra.mxu0 %v851
    %967 = vmatpush.msra.mxu0 %v847
    %968 = vmatpush.msra.mxu0 %v843
    %969 = vmatpush.msra.mxu0 %v839
    %970 = vmatpush.msra.mxu0 %v835
    %971 = vmatpush.msra.mxu0 %v831
    %972 = vmatpush.msra.mxu0 %v827
    %973 = vmatpush.msra.mxu0 %v823
    %974 = vmatpush.msra.mxu0 %v819
    %975 = vmatmul.f32.gmra.mxu0 %v154
    %v976 = vpop.f32.mrf.mxu0
    %v977 = vadd.f32 %v885, %v976
    %978 = vmatmul.f32.gmra.mxu0 %v155
    %v979 = vpop.f32.mrf.mxu0
    %v980 = vadd.f32 %v885, %v979
    %981 = vdwg.mxu0
    %v982 = vmax.f32 %v908, 0.0
    %v983 = vmax.f32 %v931, 0.0
    %v984 = vmax.f32 %v954, 0.0
    %v985 = vmax.f32 %v977, 0.0
    %v986 = vmax.f32 %v911, 0.0
    %v987 = vmax.f32 %v934, 0.0
    %v988 = vmax.f32 %v957, 0.0
    %v989 = vmax.f32 %v980, 0.0
    %v990 = vld [vmem:[#allocation11 + $0x400] sm:$0xff]
    %v991 = vld [vmem:[#allocation11 + $0x408] sm:$0xff]
    %v992 = vld [vmem:[#allocation11 + $0x410] sm:$0xff]
    %v993 = vld [vmem:[#allocation11 + $0x418] sm:$0xff]
    %v994 = vld [vmem:[#allocation11 + $0x420] sm:$0xff]
    %v995 = vld [vmem:[#allocation11 + $0x428] sm:$0xff]
    %v996 = vld [vmem:[#allocation11 + $0x430] sm:$0xff]
    %v997 = vld [vmem:[#allocation11 + $0x438] sm:$0xff]
    %v998 = vld [vmem:[#allocation11 + $0x440] sm:$0xff]
    %v999 = vld [vmem:[#allocation11 + $0x448] sm:$0xff]
    %v1000 = vld [vmem:[#allocation11 + $0x450] sm:$0xff]
    %v1001 = vld [vmem:[#allocation11 + $0x458] sm:$0xff]
    %v1002 = vld [vmem:[#allocation11 + $0x460] sm:$0xff]
    %v1003 = vld [vmem:[#allocation11 + $0x468] sm:$0xff]
    %v1004 = vld [vmem:[#allocation11 + $0x470] sm:$0xff]
    %v1005 = vld [vmem:[#allocation11 + $0x478] sm:$0xff]
    %v1006 = vld [vmem:[#allocation11 + $0x480] sm:$0xff]
    %v1007 = vld [vmem:[#allocation11 + $0x488] sm:$0xff]
    %v1008 = vld [vmem:[#allocation11 + $0x490] sm:$0xff]
    %v1009 = vld [vmem:[#allocation11 + $0x498] sm:$0xff]
    %v1010 = vld [vmem:[#allocation11 + $0x4a0] sm:$0xff]
    %v1011 = vld [vmem:[#allocation11 + $0x4a8] sm:$0xff]
    %v1012 = vld [vmem:[#allocation11 + $0x4b0] sm:$0xff]
    %v1013 = vld [vmem:[#allocation11 + $0x4b8] sm:$0xff]
    %v1014 = vld [vmem:[#allocation11 + $0x4c0] sm:$0xff]
    %v1015 = vld [vmem:[#allocation11 + $0x4c8] sm:$0xff]
    %v1016 = vld [vmem:[#allocation11 + $0x4d0] sm:$0xff]
    %v1017 = vld [vmem:[#allocation11 + $0x4d8] sm:$0xff]
    %v1018 = vld [vmem:[#allocation11 + $0x4e0] sm:$0xff]
    %v1019 = vld [vmem:[#allocation11 + $0x4e8] sm:$0xff]
    %v1020 = vld [vmem:[#allocation11 + $0x4f0] sm:$0xff]
    %v1021 = vld [vmem:[#allocation11 + $0x4f8] sm:$0xff]
    %v1022 = vld [vmem:[#allocation11 + $0x500] sm:$0xff]
    %v1023 = vld [vmem:[#allocation11 + $0x508] sm:$0xff]
    %v1024 = vld [vmem:[#allocation11 + $0x510] sm:$0xff]
    %v1025 = vld [vmem:[#allocation11 + $0x518] sm:$0xff]
    %v1026 = vld [vmem:[#allocation11 + $0x520] sm:$0xff]
    %v1027 = vld [vmem:[#allocation11 + $0x528] sm:$0xff]
    %v1028 = vld [vmem:[#allocation11 + $0x530] sm:$0xff]
    %v1029 = vld [vmem:[#allocation11 + $0x538] sm:$0xff]
    %v1030 = vld [vmem:[#allocation11 + $0x540] sm:$0xff]
    %v1031 = vld [vmem:[#allocation11 + $0x548] sm:$0xff]
    %v1032 = vld [vmem:[#allocation11 + $0x550] sm:$0xff]
    %v1033 = vld [vmem:[#allocation11 + $0x558] sm:$0xff]
    %v1034 = vld [vmem:[#allocation11 + $0x560] sm:$0xff]
    %v1035 = vld [vmem:[#allocation11 + $0x568] sm:$0xff]
    %v1036 = vld [vmem:[#allocation11 + $0x570] sm:$0xff]
    %v1037 = vld [vmem:[#allocation11 + $0x578] sm:$0xff]
    %v1038 = vld [vmem:[#allocation11 + $0x580] sm:$0xff]
    %v1039 = vld [vmem:[#allocation11 + $0x588] sm:$0xff]
    %v1040 = vld [vmem:[#allocation11 + $0x590] sm:$0xff]
    %v1041 = vld [vmem:[#allocation11 + $0x598] sm:$0xff]
    %v1042 = vld [vmem:[#allocation11 + $0x5a0] sm:$0xff]
    %v1043 = vld [vmem:[#allocation11 + $0x5a8] sm:$0xff]
    %v1044 = vld [vmem:[#allocation11 + $0x5b0] sm:$0xff]
    %v1045 = vld [vmem:[#allocation11 + $0x5b8] sm:$0xff]
    %v1046 = vld [vmem:[#allocation11 + $0x5c0] sm:$0xff]
    %v1047 = vld [vmem:[#allocation11 + $0x5c8] sm:$0xff]
    %v1048 = vld [vmem:[#allocation11 + $0x5d0] sm:$0xff]
    %v1049 = vld [vmem:[#allocation11 + $0x5d8] sm:$0xff]
    %v1050 = vld [vmem:[#allocation11 + $0x5e0] sm:$0xff]
    %v1051 = vld [vmem:[#allocation11 + $0x5e8] sm:$0xff]
    %v1052 = vld [vmem:[#allocation11 + $0x5f0] sm:$0xff]
    %v1053 = vld [vmem:[#allocation11 + $0x5f8] sm:$0xff]
    %1054 = vmatpush.msra.mxu0 %v1005
    %1055 = vmatpush.msra.mxu0 %v1004
    %1056 = vmatpush.msra.mxu0 %v1003
    %1057 = vmatpush.msra.mxu0 %v1002
    %1058 = vmatpush.msra.mxu0 %v1001
    %1059 = vmatpush.msra.mxu0 %v1000
    %1060 = vmatpush.msra.mxu0 %v999
    %1061 = vmatpush.msra.mxu0 %v998
    %1062 = vmatpush.msra.mxu0 %v997
    %1063 = vmatpush.msra.mxu0 %v996
    %1064 = vmatpush.msra.mxu0 %v995
    %1065 = vmatpush.msra.mxu0 %v994
    %1066 = vmatpush.msra.mxu0 %v993
    %1067 = vmatpush.msra.mxu0 %v992
    %1068 = vmatpush.msra.mxu0 %v991
    %1069 = vmatpush.msra.mxu0 %v990
    %1070 = vmatmul.f32.gmra.mxu0 %v982
    %v1071 = vpop.f32.mrf.mxu0
    %v1072 = vadd.f32 0.0, %v1071
    %1073 = vmatmul.f32.gmra.mxu0 %v986
    %v1074 = vpop.f32.mrf.mxu0
    %v1075 = vadd.f32 0.0, %v1074
    %1076 = vdwg.mxu0
    %1077 = vmatpush.msra.mxu0 %v1021
    %1078 = vmatpush.msra.mxu0 %v1020
    %1079 = vmatpush.msra.mxu0 %v1019
    %1080 = vmatpush.msra.mxu0 %v1018
    %1081 = vmatpush.msra.mxu0 %v1017
    %1082 = vmatpush.msra.mxu0 %v1016
    %1083 = vmatpush.msra.mxu0 %v1015
    %1084 = vmatpush.msra.mxu0 %v1014
    %1085 = vmatpush.msra.mxu0 %v1013
    %1086 = vmatpush.msra.mxu0 %v1012
    %1087 = vmatpush.msra.mxu0 %v1011
    %1088 = vmatpush.msra.mxu0 %v1010
    %1089 = vmatpush.msra.mxu0 %v1009
    %1090 = vmatpush.msra.mxu0 %v1008
    %1091 = vmatpush.msra.mxu0 %v1007
    %1092 = vmatpush.msra.mxu0 %v1006
    %1093 = vmatmul.f32.gmra.mxu0 %v983
    %v1094 = vpop.f32.mrf.mxu0
    %v1095 = vadd.f32 %v1072, %v1094
    %1096 = vmatmul.f32.gmra.mxu0 %v987
    %v1097 = vpop.f32.mrf.mxu0
    %v1098 = vadd.f32 %v1075, %v1097
    %1099 = vdwg.mxu0
    %1100 = vmatpush.msra.mxu0 %v1037
    %1101 = vmatpush.msra.mxu0 %v1036
    %1102 = vmatpush.msra.mxu0 %v1035
    %1103 = vmatpush.msra.mxu0 %v1034
    %1104 = vmatpush.msra.mxu0 %v1033
    %1105 = vmatpush.msra.mxu0 %v1032
    %1106 = vmatpush.msra.mxu0 %v1031
    %1107 = vmatpush.msra.mxu0 %v1030
    %1108 = vmatpush.msra.mxu0 %v1029
    %1109 = vmatpush.msra.mxu0 %v1028
    %1110 = vmatpush.msra.mxu0 %v1027
    %1111 = vmatpush.msra.mxu0 %v1026
    %1112 = vmatpush.msra.mxu0 %v1025
    %1113 = vmatpush.msra.mxu0 %v1024
    %1114 = vmatpush.msra.mxu0 %v1023
    %1115 = vmatpush.msra.mxu0 %v1022
    %1116 = vmatmul.f32.gmra.mxu0 %v984
    %v1117 = vpop.f32.mrf.mxu0
    %v1118 = vadd.f32 %v1095, %v1117
    %1119 = vmatmul.f32.gmra.mxu0 %v988
    %v1120 = vpop.f32.mrf.mxu0
    %v1121 = vadd.f32 %v1098, %v1120
    %1122 = vdwg.mxu0
    %1123 = vmatpush.msra.mxu0 %v1053
    %1124 = vmatpush.msra.mxu0 %v1052
    %1125 = vmatpush.msra.mxu0 %v1051
    %1126 = vmatpush.msra.mxu0 %v1050
    %1127 = vmatpush.msra.mxu0 %v1049
    %1128 = vmatpush.msra.mxu0 %v1048
    %1129 = vmatpush.msra.mxu0 %v1047
    %1130 = vmatpush.msra.mxu0 %v1046
    %1131 = vmatpush.msra.mxu0 %v1045
    %1132 = vmatpush.msra.mxu0 %v1044
    %1133 = vmatpush.msra.mxu0 %v1043
    %1134 = vmatpush.msra.mxu0 %v1042
    %1135 = vmatpush.msra.mxu0 %v1041
    %1136 = vmatpush.msra.mxu0 %v1040
    %1137 = vmatpush.msra.mxu0 %v1039
    %1138 = vmatpush.msra.mxu0 %v1038
    %1139 = vmatmul.f32.gmra.mxu0 %v985
    %v1140 = vpop.f32.mrf.mxu0
    %v1141 = vadd.f32 %v1118, %v1140
    %1142 = vmatmul.f32.gmra.mxu0 %v989
    %v1143 = vpop.f32.mrf.mxu0
    %v1144 = vadd.f32 %v1121, %v1143
    %1145 = vdwg.mxu0
    %v1146 = vadd.f32 %v811, %v1141
    %v1147 = vadd.f32 %v814, %v1144
    %v1148 = vld [vmem:[#allocation8 + $0x60] sm:$0xff]
    %v1149 = vld [vmem:[#allocation8 + $0x68] sm:$0xff]
    %v1150 = vld [vmem:[#allocation8 + $0x70] sm:$0xff]
    %v1151 = vld [vmem:[#allocation8 + $0x78] sm:$0xff]
    %v1152 = vld [vmem:[#allocation8 + $0xe0] sm:$0xff]
    %v1153 = vld [vmem:[#allocation8 + $0xe8] sm:$0xff]
    %v1154 = vld [vmem:[#allocation8 + $0xf0] sm:$0xff]
    %v1155 = vld [vmem:[#allocation8 + $0xf8] sm:$0xff]
    %v1156 = vld [vmem:[#allocation8 + $0x160] sm:$0xff]
    %v1157 = vld [vmem:[#allocation8 + $0x168] sm:$0xff]
    %v1158 = vld [vmem:[#allocation8 + $0x170] sm:$0xff]
    %v1159 = vld [vmem:[#allocation8 + $0x178] sm:$0xff]
    %v1160 = vld [vmem:[#allocation8 + $0x1e0] sm:$0xff]
    %v1161 = vld [vmem:[#allocation8 + $0x1e8] sm:$0xff]
    %v1162 = vld [vmem:[#allocation8 + $0x1f0] sm:$0xff]
    %v1163 = vld [vmem:[#allocation8 + $0x1f8] sm:$0xff]
    %v1164 = vld [vmem:[#allocation8 + $0x260] sm:$0xff]
    %v1165 = vld [vmem:[#allocation8 + $0x268] sm:$0xff]
    %v1166 = vld [vmem:[#allocation8 + $0x270] sm:$0xff]
    %v1167 = vld [vmem:[#allocation8 + $0x278] sm:$0xff]
    %v1168 = vld [vmem:[#allocation8 + $0x2e0] sm:$0xff]
    %v1169 = vld [vmem:[#allocation8 + $0x2e8] sm:$0xff]
    %v1170 = vld [vmem:[#allocation8 + $0x2f0] sm:$0xff]
    %v1171 = vld [vmem:[#allocation8 + $0x2f8] sm:$0xff]
    %v1172 = vld [vmem:[#allocation8 + $0x360] sm:$0xff]
    %v1173 = vld [vmem:[#allocation8 + $0x368] sm:$0xff]
    %v1174 = vld [vmem:[#allocation8 + $0x370] sm:$0xff]
    %v1175 = vld [vmem:[#allocation8 + $0x378] sm:$0xff]
    %v1176 = vld [vmem:[#allocation8 + $0x3e0] sm:$0xff]
    %v1177 = vld [vmem:[#allocation8 + $0x3e8] sm:$0xff]
    %v1178 = vld [vmem:[#allocation8 + $0x3f0] sm:$0xff]
    %v1179 = vld [vmem:[#allocation8 + $0x3f8] sm:$0xff]
    %v1180 = vld [vmem:[#allocation8 + $0x460] sm:$0xff]
    %v1181 = vld [vmem:[#allocation8 + $0x468] sm:$0xff]
    %v1182 = vld [vmem:[#allocation8 + $0x470] sm:$0xff]
    %v1183 = vld [vmem:[#allocation8 + $0x478] sm:$0xff]
    %v1184 = vld [vmem:[#allocation8 + $0x4e0] sm:$0xff]
    %v1185 = vld [vmem:[#allocation8 + $0x4e8] sm:$0xff]
    %v1186 = vld [vmem:[#allocation8 + $0x4f0] sm:$0xff]
    %v1187 = vld [vmem:[#allocation8 + $0x4f8] sm:$0xff]
    %v1188 = vld [vmem:[#allocation8 + $0x560] sm:$0xff]
    %v1189 = vld [vmem:[#allocation8 + $0x568] sm:$0xff]
    %v1190 = vld [vmem:[#allocation8 + $0x570] sm:$0xff]
    %v1191 = vld [vmem:[#allocation8 + $0x578] sm:$0xff]
    %v1192 = vld [vmem:[#allocation8 + $0x5e0] sm:$0xff]
    %v1193 = vld [vmem:[#allocation8 + $0x5e8] sm:$0xff]
    %v1194 = vld [vmem:[#allocation8 + $0x5f0] sm:$0xff]
    %v1195 = vld [vmem:[#allocation8 + $0x5f8] sm:$0xff]
    %v1196 = vld [vmem:[#allocation8 + $0x660] sm:$0xff]
    %v1197 = vld [vmem:[#allocation8 + $0x668] sm:$0xff]
    %v1198 = vld [vmem:[#allocation8 + $0x670] sm:$0xff]
    %v1199 = vld [vmem:[#allocation8 + $0x678] sm:$0xff]
    %v1200 = vld [vmem:[#allocation8 + $0x6e0] sm:$0xff]
    %v1201 = vld [vmem:[#allocation8 + $0x6e8] sm:$0xff]
    %v1202 = vld [vmem:[#allocation8 + $0x6f0] sm:$0xff]
    %v1203 = vld [vmem:[#allocation8 + $0x6f8] sm:$0xff]
    %v1204 = vld [vmem:[#allocation8 + $0x760] sm:$0xff]
    %v1205 = vld [vmem:[#allocation8 + $0x768] sm:$0xff]
    %v1206 = vld [vmem:[#allocation8 + $0x770] sm:$0xff]
    %v1207 = vld [vmem:[#allocation8 + $0x778] sm:$0xff]
    %v1208 = vld [vmem:[#allocation8 + $0x7e0] sm:$0xff]
    %v1209 = vld [vmem:[#allocation8 + $0x7e8] sm:$0xff]
    %v1210 = vld [vmem:[#allocation8 + $0x7f0] sm:$0xff]
    %v1211 = vld [vmem:[#allocation8 + $0x7f8] sm:$0xff]
    %v1212 = vld [vmem:[#allocation9 + $0xc] sm:$0xf]
    %v1214 = vperm.slane %v1212, 0
    %v1215 = vperm.slane %v1212, 1
    %v1216 = vperm.slane %v1212, 2
    %v1217 = vperm.slane %v1212, 3
    %1222 = vmatpush.msra.mxu0 %v1208
    %1223 = vmatpush.msra.mxu0 %v1204
    %1224 = vmatpush.msra.mxu0 %v1200
    %1225 = vmatpush.msra.mxu0 %v1196
    %1226 = vmatpush.msra.mxu0 %v1192
    %1227 = vmatpush.msra.mxu0 %v1188
    %1228 = vmatpush.msra.mxu0 %v1184
    %1229 = vmatpush.msra.mxu0 %v1180
    %1230 = vmatpush.msra.mxu0 %v1176
    %1231 = vmatpush.msra.mxu0 %v1172
    %1232 = vmatpush.msra.mxu0 %v1168
    %1233 = vmatpush.msra.mxu0 %v1164
    %1234 = vmatpush.msra.mxu0 %v1160
    %1235 = vmatpush.msra.mxu0 %v1156
    %1236 = vmatpush.msra.mxu0 %v1152
    %1237 = vmatpush.msra.mxu0 %v1148
    %1238 = vmatmul.f32.gmra.mxu0 %v154
    %v1239 = vpop.f32.mrf.mxu0
    %v1240 = vadd.f32 %v1214, %v1239
    %1241 = vmatmul.f32.gmra.mxu0 %v155
    %v1242 = vpop.f32.mrf.mxu0
    %v1243 = vadd.f32 %v1214, %v1242
    %1244 = vdwg.mxu0
    %1245 = vmatpush.msra.mxu0 %v1209
    %1246 = vmatpush.msra.mxu0 %v1205
    %1247 = vmatpush.msra.mxu0 %v1201
    %1248 = vmatpush.msra.mxu0 %v1197
    %1249 = vmatpush.msra.mxu0 %v1193
    %1250 = vmatpush.msra.mxu0 %v1189
    %1251 = vmatpush.msra.mxu0 %v1185
    %1252 = vmatpush.msra.mxu0 %v1181
    %1253 = vmatpush.msra.mxu0 %v1177
    %1254 = vmatpush.msra.mxu0 %v1173
    %1255 = vmatpush.msra.mxu0 %v1169
    %1256 = vmatpush.msra.mxu0 %v1165
    %1257 = vmatpush.msra.mxu0 %v1161
    %1258 = vmatpush.msra.mxu0 %v1157
    %1259 = vmatpush.msra.mxu0 %v1153
    %1260 = vmatpush.msra.mxu0 %v1149
    %1261 = vmatmul.f32.gmra.mxu0 %v154
    %v1262 = vpop.f32.mrf.mxu0
    %v1263 = vadd.f32 %v1215, %v1262
    %1264 = vmatmul.f32.gmra.mxu0 %v155
    %v1265 = vpop.f32.mrf.mxu0
    %v1266 = vadd.f32 %v1215, %v1265
    %1267 = vdwg.mxu0
    %1268 = vmatpush.msra.mxu0 %v1210
    %1269 = vmatpush.msra.mxu0 %v1206
    %1270 = vmatpush.msra.mxu0 %v1202
    %1271 = vmatpush.msra.mxu0 %v1198
    %1272 = vmatpush.msra.mxu0 %v1194
    %1273 = vmatpush.msra.mxu0 %v1190
    %1274 = vmatpush.msra.mxu0 %v1186
    %1275 = vmatpush.msra.mxu0 %v1182
    %1276 = vmatpush.msra.mxu0 %v1178
    %1277 = vmatpush.msra.mxu0 %v1174
    %1278 = vmatpush.msra.mxu0 %v1170
    %1279 = vmatpush.msra.mxu0 %v1166
    %1280 = vmatpush.msra.mxu0 %v1162
    %1281 = vmatpush.msra.mxu0 %v1158
    %1282 = vmatpush.msra.mxu0 %v1154
    %1283 = vmatpush.msra.mxu0 %v1150
    %1284 = vmatmul.f32.gmra.mxu0 %v154
    %v1285 = vpop.f32.mrf.mxu0
    %v1286 = vadd.f32 %v1216, %v1285
    %1287 = vmatmul.f32.gmra.mxu0 %v155
    %v1288 = vpop.f32.mrf.mxu0
    %v1289 = vadd.f32 %v1216, %v1288
    %1290 = vdwg.mxu0
    %1291 = vmatpush.msra.mxu0 %v1211
    %1292 = vmatpush.msra.mxu0 %v1207
    %1293 = vmatpush.msra.mxu0 %v1203
    %1294 = vmatpush.msra.mxu0 %v1199
    %1295 = vmatpush.msra.mxu0 %v1195
    %1296 = vmatpush.msra.mxu0 %v1191
    %1297 = vmatpush.msra.mxu0 %v1187
    %1298 = vmatpush.msra.mxu0 %v1183
    %1299 = vmatpush.msra.mxu0 %v1179
    %1300 = vmatpush.msra.mxu0 %v1175
    %1301 = vmatpush.msra.mxu0 %v1171
    %1302 = vmatpush.msra.mxu0 %v1167
    %1303 = vmatpush.msra.mxu0 %v1163
    %1304 = vmatpush.msra.mxu0 %v1159
    %1305 = vmatpush.msra.mxu0 %v1155
    %1306 = vmatpush.msra.mxu0 %v1151
    %1307 = vmatmul.f32.gmra.mxu0 %v154
    %v1308 = vpop.f32.mrf.mxu0
    %v1309 = vadd.f32 %v1217, %v1308
    %1310 = vmatmul.f32.gmra.mxu0 %v155
    %v1311 = vpop.f32.mrf.mxu0
    %v1312 = vadd.f32 %v1217, %v1311
    %1313 = vdwg.mxu0
    %v1314 = vmax.f32 %v1240, 0.0
    %v1315 = vmax.f32 %v1263, 0.0
    %v1316 = vmax.f32 %v1286, 0.0
    %v1317 = vmax.f32 %v1309, 0.0
    %v1318 = vmax.f32 %v1243, 0.0
    %v1319 = vmax.f32 %v1266, 0.0
    %v1320 = vmax.f32 %v1289, 0.0
    %v1321 = vmax.f32 %v1312, 0.0
    %v1322 = vld [vmem:[#allocation11 + $0x600] sm:$0xff]
    %v1323 = vld [vmem:[#allocation11 + $0x608] sm:$0xff]
    %v1324 = vld [vmem:[#allocation11 + $0x610] sm:$0xff]
    %v1325 = vld [vmem:[#allocation11 + $0x618] sm:$0xff]
    %v1326 = vld [vmem:[#allocation11 + $0x620] sm:$0xff]
    %v1327 = vld [vmem:[#allocation11 + $0x628] sm:$0xff]
    %v1328 = vld [vmem:[#allocation11 + $0x630] sm:$0xff]
    %v1329 = vld [vmem:[#allocation11 + $0x638] sm:$0xff]
    %v1330 = vld [vmem:[#allocation11 + $0x640] sm:$0xff]
    %v1331 = vld [vmem:[#allocation11 + $0x648] sm:$0xff]
    %v1332 = vld [vmem:[#allocation11 + $0x650] sm:$0xff]
    %v1333 = vld [vmem:[#allocation11 + $0x658] sm:$0xff]
    %v1334 = vld [vmem:[#allocation11 + $0x660] sm:$0xff]
    %v1335 = vld [vmem:[#allocation11 + $0x668] sm:$0xff]
    %v1336 = vld [vmem:[#allocation11 + $0x670] sm:$0xff]
    %v1337 = vld [vmem:[#allocation11 + $0x678] sm:$0xff]
    %v1338 = vld [vmem:[#allocation11 + $0x680] sm:$0xff]
    %v1339 = vld [vmem:[#allocation11 + $0x688] sm:$0xff]
    %v1340 = vld [vmem:[#allocation11 + $0x690] sm:$0xff]
    %v1341 = vld [vmem:[#allocation11 + $0x698] sm:$0xff]
    %v1342 = vld [vmem:[#allocation11 + $0x6a0] sm:$0xff]
    %v1343 = vld [vmem:[#allocation11 + $0x6a8] sm:$0xff]
    %v1344 = vld [vmem:[#allocation11 + $0x6b0] sm:$0xff]
    %v1345 = vld [vmem:[#allocation11 + $0x6b8] sm:$0xff]
    %v1346 = vld [vmem:[#allocation11 + $0x6c0] sm:$0xff]
    %v1347 = vld [vmem:[#allocation11 + $0x6c8] sm:$0xff]
    %v1348 = vld [vmem:[#allocation11 + $0x6d0] sm:$0xff]
    %v1349 = vld [vmem:[#allocation11 + $0x6d8] sm:$0xff]
    %v1350 = vld [vmem:[#allocation11 + $0x6e0] sm:$0xff]
    %v1351 = vld [vmem:[#allocation11 + $0x6e8] sm:$0xff]
    %v1352 = vld [vmem:[#allocation11 + $0x6f0] sm:$0xff]
    %v1353 = vld [vmem:[#allocation11 + $0x6f8] sm:$0xff]
    %v1354 = vld [vmem:[#allocation11 + $0x700] sm:$0xff]
    %v1355 = vld [vmem:[#allocation11 + $0x708] sm:$0xff]
    %v1356 = vld [vmem:[#allocation11 + $0x710] sm:$0xff]
    %v1357 = vld [vmem:[#allocation11 + $0x718] sm:$0xff]
    %v1358 = vld [vmem:[#allocation11 + $0x720] sm:$0xff]
    %v1359 = vld [vmem:[#allocation11 + $0x728] sm:$0xff]
    %v1360 = vld [vmem:[#allocation11 + $0x730] sm:$0xff]
    %v1361 = vld [vmem:[#allocation11 + $0x738] sm:$0xff]
    %v1362 = vld [vmem:[#allocation11 + $0x740] sm:$0xff]
    %v1363 = vld [vmem:[#allocation11 + $0x748] sm:$0xff]
    %v1364 = vld [vmem:[#allocation11 + $0x750] sm:$0xff]
    %v1365 = vld [vmem:[#allocation11 + $0x758] sm:$0xff]
    %v1366 = vld [vmem:[#allocation11 + $0x760] sm:$0xff]
    %v1367 = vld [vmem:[#allocation11 + $0x768] sm:$0xff]
    %v1368 = vld [vmem:[#allocation11 + $0x770] sm:$0xff]
    %v1369 = vld [vmem:[#allocation11 + $0x778] sm:$0xff]
    %v1370 = vld [vmem:[#allocation11 + $0x780] sm:$0xff]
    %v1371 = vld [vmem:[#allocation11 + $0x788] sm:$0xff]
    %v1372 = vld [vmem:[#allocation11 + $0x790] sm:$0xff]
    %v1373 = vld [vmem:[#allocation11 + $0x798] sm:$0xff]
    %v1374 = vld [vmem:[#allocation11 + $0x7a0] sm:$0xff]
    %v1375 = vld [vmem:[#allocation11 + $0x7a8] sm:$0xff]
    %v1376 = vld [vmem:[#allocation11 + $0x7b0] sm:$0xff]
    %v1377 = vld [vmem:[#allocation11 + $0x7b8] sm:$0xff]
    %v1378 = vld [vmem:[#allocation11 + $0x7c0] sm:$0xff]
    %v1379 = vld [vmem:[#allocation11 + $0x7c8] sm:$0xff]
    %v1380 = vld [vmem:[#allocation11 + $0x7d0] sm:$0xff]
    %v1381 = vld [vmem:[#allocation11 + $0x7d8] sm:$0xff]
    %v1382 = vld [vmem:[#allocation11 + $0x7e0] sm:$0xff]
    %v1383 = vld [vmem:[#allocation11 + $0x7e8] sm:$0xff]
    %v1384 = vld [vmem:[#allocation11 + $0x7f0] sm:$0xff]
    %v1385 = vld [vmem:[#allocation11 + $0x7f8] sm:$0xff]
    %1386 = vmatpush.msra.mxu0 %v1337
    %1387 = vmatpush.msra.mxu0 %v1336
    %1388 = vmatpush.msra.mxu0 %v1335
    %1389 = vmatpush.msra.mxu0 %v1334
    %1390 = vmatpush.msra.mxu0 %v1333
    %1391 = vmatpush.msra.mxu0 %v1332
    %1392 = vmatpush.msra.mxu0 %v1331
    %1393 = vmatpush.msra.mxu0 %v1330
    %1394 = vmatpush.msra.mxu0 %v1329
    %1395 = vmatpush.msra.mxu0 %v1328
    %1396 = vmatpush.msra.mxu0 %v1327
    %1397 = vmatpush.msra.mxu0 %v1326
    %1398 = vmatpush.msra.mxu0 %v1325
    %1399 = vmatpush.msra.mxu0 %v1324
    %1400 = vmatpush.msra.mxu0 %v1323
    %1401 = vmatpush.msra.mxu0 %v1322
    %1402 = vmatmul.f32.gmra.mxu0 %v1314
    %v1403 = vpop.f32.mrf.mxu0
    %v1404 = vadd.f32 0.0, %v1403
    %1405 = vmatmul.f32.gmra.mxu0 %v1318
    %v1406 = vpop.f32.mrf.mxu0
    %v1407 = vadd.f32 0.0, %v1406
    %1408 = vdwg.mxu0
    %1409 = vmatpush.msra.mxu0 %v1353
    %1410 = vmatpush.msra.mxu0 %v1352
    %1411 = vmatpush.msra.mxu0 %v1351
    %1412 = vmatpush.msra.mxu0 %v1350
    %1413 = vmatpush.msra.mxu0 %v1349
    %1414 = vmatpush.msra.mxu0 %v1348
    %1415 = vmatpush.msra.mxu0 %v1347
    %1416 = vmatpush.msra.mxu0 %v1346
    %1417 = vmatpush.msra.mxu0 %v1345
    %1418 = vmatpush.msra.mxu0 %v1344
    %1419 = vmatpush.msra.mxu0 %v1343
    %1420 = vmatpush.msra.mxu0 %v1342
    %1421 = vmatpush.msra.mxu0 %v1341
    %1422 = vmatpush.msra.mxu0 %v1340
    %1423 = vmatpush.msra.mxu0 %v1339
    %1424 = vmatpush.msra.mxu0 %v1338
    %1425 = vmatmul.f32.gmra.mxu0 %v1315
    %v1426 = vpop.f32.mrf.mxu0
    %v1427 = vadd.f32 %v1404, %v1426
    %1428 = vmatmul.f32.gmra.mxu0 %v1319
    %v1429 = vpop.f32.mrf.mxu0
    %v1430 = vadd.f32 %v1407, %v1429
    %1431 = vdwg.mxu0
    %1432 = vmatpush.msra.mxu0 %v1369
    %1433 = vmatpush.msra.mxu0 %v1368
    %1434 = vmatpush.msra.mxu0 %v1367
    %1435 = vmatpush.msra.mxu0 %v1366
    %1436 = vmatpush.msra.mxu0 %v1365
    %1437 = vmatpush.msra.mxu0 %v1364
    %1438 = vmatpush.msra.mxu0 %v1363
    %1439 = vmatpush.msra.mxu0 %v1362
    %1440 = vmatpush.msra.mxu0 %v1361
    %1441 = vmatpush.msra.mxu0 %v1360
    %1442 = vmatpush.msra.mxu0 %v1359
    %1443 = vmatpush.msra.mxu0 %v1358
    %1444 = vmatpush.msra.mxu0 %v1357
    %1445 = vmatpush.msra.mxu0 %v1356
    %1446 = vmatpush.msra.mxu0 %v1355
    %1447 = vmatpush.msra.mxu0 %v1354
    %1448 = vmatmul.f32.gmra.mxu0 %v1316
    %v1449 = vpop.f32.mrf.mxu0
    %v1450 = vadd.f32 %v1427, %v1449
    %1451 = vmatmul.f32.gmra.mxu0 %v1320
    %v1452 = vpop.f32.mrf.mxu0
    %v1453 = vadd.f32 %v1430, %v1452
    %1454 = vdwg.mxu0
    %1455 = vmatpush.msra.mxu0 %v1385
    %1456 = vmatpush.msra.mxu0 %v1384
    %1457 = vmatpush.msra.mxu0 %v1383
    %1458 = vmatpush.msra.mxu0 %v1382
    %1459 = vmatpush.msra.mxu0 %v1381
    %1460 = vmatpush.msra.mxu0 %v1380
    %1461 = vmatpush.msra.mxu0 %v1379
    %1462 = vmatpush.msra.mxu0 %v1378
    %1463 = vmatpush.msra.mxu0 %v1377
    %1464 = vmatpush.msra.mxu0 %v1376
    %1465 = vmatpush.msra.mxu0 %v1375
    %1466 = vmatpush.msra.mxu0 %v1374
    %1467 = vmatpush.msra.mxu0 %v1373
    %1468 = vmatpush.msra.mxu0 %v1372
    %1469 = vmatpush.msra.mxu0 %v1371
    %1470 = vmatpush.msra.mxu0 %v1370
    %1471 = vmatmul.f32.gmra.mxu0 %v1317
    %v1472 = vpop.f32.mrf.mxu0
    %v1473 = vadd.f32 %v1450, %v1472
    %1474 = vmatmul.f32.gmra.mxu0 %v1321
    %v1475 = vpop.f32.mrf.mxu0
    %v1476 = vadd.f32 %v1453, %v1475
    %1477 = vdwg.mxu0
    %v1478 = vadd.f32 %v1146, %v1473
    %v1479 = vadd.f32 %v1147, %v1476
    %v1480 = vld [vmem:[%s6] sm:$0x1]
    %v1482 = vperm.slane %v1480, 0
    %v1484 = vadd.f32 %v1478, %v1482
    %v1485 = vadd.f32 %v1479, %v1482
    %v1486 = vmax.f32 %v1484, 0.0
    %v1487 = vmax.f32 %v1485, 0.0
    %v1488 = vld [vmem:[%s7] sm:$0x1]
    %v1489 = vld [vmem:[#allocation2] sm:$0x1]
    %1491 = vset.pattern.permute.xlu0 0
    %1492 = vperm.xlu0 %1491, %v1489
    %v1493 = vpop.permute.xlu0 %1492
    %v1495 = vperm.slane %v1493, 0
    %1496 = vmatpush.xpose.msra.mxu0 0.0
    %1497 = vmatpush.xpose.msra.mxu0 0.0
    %1498 = vmatpush.xpose.msra.mxu0 0.0
    %1499 = vmatpush.xpose.msra.mxu0 0.0
    %1500 = vmatpush.xpose.msra.mxu0 0.0
    %1501 = vmatpush.xpose.msra.mxu0 0.0
    %1502 = vmatpush.xpose.msra.mxu0 0.0
    %1503 = vmatpush.xpose.msra.mxu0 0.0
    %1504 = vmatpush.xpose.msra.mxu0 0.0
    %1505 = vmatpush.xpose.msra.mxu0 0.0
    %1506 = vmatpush.xpose.msra.mxu0 0.0
    %1507 = vmatpush.xpose.msra.mxu0 0.0
    %1508 = vmatpush.xpose.msra.mxu0 0.0
    %1509 = vmatpush.xpose.msra.mxu0 0.0
    %1510 = vmatpush.xpose.msra.mxu0 %v1487
    %1511 = vmatpush.xpose.msra.mxu0 %v1486
    %1512 = vmatmul.f32.gmra.mxu0 %v1488
    %v1513 = vpop.f32.mrf.mxu0
    %v1514 = vadd.f32 %v1495, %v1513
    %1515 = vdwg.mxu0
    %vm1516 = vcmask 122880
    %1517 = vst.msk [vmem:[#allocation12] sm:$0x1] %vm1516, %v1514
    // Predicated region
    $region58: #{tpu_custom_call.1} parent=1 // pred_check
      _
    $region59: #{tpu_custom_call.1} parent=1 // pred_check_branch
      %1519 = sbr.rel (0) target = $region61
    $region60: #{tpu_custom_call.1} parent=1 // pred_region
      %1521 = vsyncadd [#allocation5], 0
      %s1523 = sshll.u32 [#allocation12], 4
      %s1524 = int_to_ptr.vmem [resolvable:$true] %s1523
      %s1525 = sshll.u32 %s9, 4
      %s1526 = int_to_ptr.hbm [resolvable:$true] %s1525
      %1528 = dma.vmem_to_hbm [thread:$0]  %s1524, 16, %s1526, [#allocation5]
    $region61: #{tpu_custom_call.1} parent=1 // pred_fallthru
      _
    // Predicated region
    $region62: #{tpu_custom_call.1} parent=1 // pred_check
      _
    $region63: #{tpu_custom_call.1} parent=1 // pred_check_branch
      %1530 = sbr.rel (0) target = $region65
    $region64: #{tpu_custom_call.1} parent=1 // pred_region
      %1532 = dma.done [#allocation5], 16
    $region65: #{tpu_custom_call.1} parent=1 // pred_fallthru
      _
    %1533 = vsyncpa [#allocation4], 1
    %1534 = vsyncpa [#allocation7], 1
    %1535 = vsyncpa [#allocation10], 1
    %1536 = vsyncpa [#allocation5], 1

</llo_original>
